<compile_context>
chip_gen: v5e
topology: v5e:2x2
jax: 0.10.0
libtpu: 0.0.40
codegen_flags: <defaults>
</compile_context>

<pallas_src>
import math
import functools

import jax
import jax.numpy as jnp
from jax.experimental import pallas as pl
from jax.experimental.pallas import tpu as pltpu

_INV_SQRT2 = 0.7071067811865476


# ----------------------------- helpers -----------------------------

def _erf(x):
    """erf via Abramowitz-Stegun 7.1.26 (max abs err ~1.5e-7); only exp/mul/div/where."""
    a1, a2, a3, a4, a5 = 0.254829592, -0.284496736, 1.421413741, -1.453152027, 1.061405429
    p = 0.3275911
    sgn = jnp.where(x >= 0.0, 1.0, -1.0)
    ax = x * sgn
    t = 1.0 / (1.0 + p * ax)
    poly = ((((a5 * t + a4) * t + a3) * t + a2) * t + a1) * t
    y = 1.0 - poly * jnp.exp(-(ax * ax))
    return sgn * y


def _gelu(x):
    # exact (erf-form) GELU, matching torch F.gelu default (computed in f32)
    return 0.5 * x * (1.0 + _erf(x * _INV_SQRT2))


def _pick_tile(dim, cap):
    """Largest tile <= cap that evenly divides dim (fall back to the full dim)."""
    if dim <= cap:
        return dim
    while cap >= 128:
        if dim % cap == 0:
            return cap
        cap //= 2
    return dim


# ----------------------------- Pallas kernels -----------------------------

def _matmul_kernel(x_ref, w_ref, b_ref, o_ref, acc_ref, *, act, pre_gelu):
    """Tiled matmul with K-reduction grid axis, f32 accumulator, optional
    GELU prologue (on x) and GELU epilogue (on x@w + b)."""
    @pl.when(pl.program_id(2) == 0)
    def _():
        acc_ref[...] = jnp.zeros_like(acc_ref)

    x = x_ref[...]                                # f32 tile
    if pre_gelu:
        x = _gelu(x)
    acc_ref[...] += jnp.dot(x.astype(jnp.bfloat16), w_ref[...],
                            preferred_element_type=jnp.float32)

    @pl.when(pl.program_id(2) == pl.num_programs(2) - 1)
    def _():
        y = acc_ref[...] + b_ref[...]
        if act == "gelu":
            y = _gelu(y)
        o_ref[...] = y


def _encoder_layer_kernel(x_ref, in_w_ref, in_b_ref, out_w_ref, out_b_ref,
                          bn1_g_ref, bn1_b_ref,
                          lin1_w_ref, lin1_b_ref, lin2_w_ref, lin2_b_ref,
                          bn2_g_ref, bn2_b_ref,
                          o_ref, *, B, S, n_heads, d_model, eps):
    """One fully fused TransformerBatchNormEncoderLayer on the (B*S, E) slab in VMEM.

    1/sqrt(head_dim) is pre-folded into the q third of the in-projection weights.
    """
    hd = d_model // n_heads
    x = x_ref[...]                                               # (B*S, E) f32
    x_bf = x.astype(jnp.bfloat16)

    # ---- multi-head self-attention ----
    qkv = jnp.dot(x_bf, in_w_ref[...],
                  preferred_element_type=jnp.float32) + in_b_ref[...]   # (B*S, 3E)

    attn_rows = []
    for b in range(B):                                           # small static batch loop
        qkv_b = qkv[b * S:(b + 1) * S]                           # (S, 3E)
        head_outs = []
        for h in range(n_heads):                                 # small static head loop
            q = qkv_b[:, h * hd:(h + 1) * hd].astype(jnp.bfloat16)
            k = qkv_b[:, d_model + h * hd:d_model + (h + 1) * hd].astype(jnp.bfloat16)
            v = qkv_b[:, 2 * d_model + h * hd:2 * d_model + (h + 1) * hd].astype(jnp.bfloat16)
            # scores: contract head dim directly (no materialized K^T)
            s = jax.lax.dot_general(q, k, (((1,), (1,)), ((), ())),
                                    preferred_element_type=jnp.float32)  # (S, S)
            m = jnp.max(s, axis=-1, keepdims=True)
            p = jnp.exp(s - m)
            denom = jnp.sum(p, axis=-1, keepdims=True)
            p = p * pl.reciprocal(denom, approx=True)            # EUP slot
            head_outs.append(jnp.dot(p.astype(jnp.bfloat16), v,
                                     preferred_element_type=jnp.float32))  # (S, hd)
        attn_rows.append(jnp.concatenate(head_outs, axis=-1))    # (S, E)
    attn = jnp.concatenate(attn_rows, axis=0)                    # (B*S, E)
    attn = jnp.dot(attn.astype(jnp.bfloat16), out_w_ref[...],
                   preferred_element_type=jnp.float32) + out_b_ref[...]

    # ---- residual + BatchNorm1 (training mode: batch stats, biased variance) ----
    y = x + attn
    mean1 = jnp.mean(y, axis=0, keepdims=True)
    var1 = jnp.mean((y - mean1) ** 2, axis=0, keepdims=True)
    y = (y - mean1) * jax.lax.rsqrt(var1 + eps) * bn1_g_ref[...] + bn1_b_ref[...]

    # ---- feed-forward (GELU) ----
    ff = jnp.dot(y.astype(jnp.bfloat16), lin1_w_ref[...],
                 preferred_element_type=jnp.float32) + lin1_b_ref[...]
    ff = _gelu(ff)
    ff = jnp.dot(ff.astype(jnp.bfloat16), lin2_w_ref[...],
                 preferred_element_type=jnp.float32) + lin2_b_ref[...]

    # ---- residual + BatchNorm2 ----
    z = y + ff
    mean2 = jnp.mean(z, axis=0, keepdims=True)
    var2 = jnp.mean((z - mean2) ** 2, axis=0, keepdims=True)
    o_ref[...] = (z - mean2) * jax.lax.rsqrt(var2 + eps) * bn2_g_ref[...] + bn2_b_ref[...]


# ----------------------------- Pallas wrappers -----------------------------

def pallas_linear(x, w, b, *, act=None, pre_gelu=False, tm=256, tn=256, tk=512):
    """y = act(x @ w + b); x f32 (cast to bf16 in-kernel), w bf16, accum/output f32."""
    M, K = x.shape
    Kw, N = w.shape
    assert K == Kw
    tm, tn, tk = _pick_tile(M, tm), _pick_tile(N, tn), _pick_tile(K, tk)
    grid = (M // tm, N // tn, K // tk)
    kern = functools.partial(_matmul_kernel, act=act, pre_gelu=pre_gelu)
    return pl.pallas_call(
        kern,
        out_shape=jax.ShapeDtypeStruct((M, N), jnp.float32),
        grid_spec=pltpu.PrefetchScalarGridSpec(
            num_scalar_prefetch=0,
            grid=grid,
            in_specs=[
                pl.BlockSpec((tm, tk), lambda i, j, k: (i, k)),
                pl.BlockSpec((tk, tn), lambda i, j, k: (k, j)),
                pl.BlockSpec((1, tn), lambda i, j, k: (0, j)),
            ],
            out_specs=pl.BlockSpec((tm, tn), lambda i, j, k: (i, j)),
            scratch_shapes=[pltpu.VMEM((tm, tn), jnp.float32)],
        ),
        compiler_params=pltpu.CompilerParams(
            dimension_semantics=("parallel", "parallel", "arbitrary")),
    )(x, w, b.reshape(1, N))


def pallas_encoder_layer(x2d, p, *, B, S, n_heads, d_model, eps=1e-5):
    """One fused TransformerBatchNormEncoderLayer. x2d: (B*S, E) f32 -> (B*S, E) f32."""
    # TODO(synk): for large B*S / d_model that exceed VMEM, split into the previous
    # multi-call tiled pipeline (tiled matmuls + blocked two-pass BatchNorm).
    BS, E = x2d.shape
    vmem = pl.BlockSpec(memory_space=pltpu.MemorySpace.VMEM)
    kern = functools.partial(_encoder_layer_kernel, B=B, S=S,
                             n_heads=n_heads, d_model=d_model, eps=eps)
    args = (
        x2d,
        p["in_proj_w"], p["in_proj_b"].reshape(1, -1),
        p["out_proj_w"], p["out_proj_b"].reshape(1, -1),
        p["bn1_g"].reshape(1, -1), p["bn1_b"].reshape(1, -1),
        p["lin1_w"], p["lin1_b"].reshape(1, -1),
        p["lin2_w"], p["lin2_b"].reshape(1, -1),
        p["bn2_g"].reshape(1, -1), p["bn2_b"].reshape(1, -1),
    )
    return pl.pallas_call(
        kern,
        out_shape=jax.ShapeDtypeStruct((BS, E), jnp.float32),
        in_specs=[vmem] * len(args),
        out_specs=vmem,
    )(*args)


# ----------------------------- model forward -----------------------------

def attention_classifier_forward(params, X, *, n_heads):
    # X: (B, T, feat_dim); params are "prepared" (scales folded, matmul weights bf16)
    B, T, Fdim = X.shape
    d_model = params["proj_w"].shape[1]

    cls = jnp.broadcast_to(params["cls_token"].astype(jnp.float32), (B, 1, Fdim))
    Xc = jnp.concatenate([cls, X], axis=1)                          # (B, S, F)
    S = T + 1
    x2d = Xc.reshape(B * S, Fdim)

    # sqrt(d_model) is folded into proj_w / proj_b
    h = pallas_linear(x2d, params["proj_w"], params["proj_b"])      # (B*S, E)

    for layer_p in params["layers"]:
        h = pallas_encoder_layer(h, layer_p, B=B, S=S,
                                 n_heads=n_heads, d_model=d_model)

    # only the cls-token rows are consumed downstream; the final GELU is fused as the
    # classifier linear's prologue and applied only to those rows.
    cls_out = h.reshape(B, S, d_model)[:, 0, :]                     # (B, E)
    logits = pallas_linear(cls_out, params["out_w"], params["out_b"], pre_gelu=True)
    return logits


# ----------------------------- parameters -----------------------------

def _dense_init(key, fan_in, fan_out):
    kw, kb = jax.random.split(key)
    lim = 1.0 / math.sqrt(fan_in)
    w = jax.random.uniform(kw, (fan_in, fan_out), jnp.float32, -lim, lim)
    b = jax.random.uniform(kb, (fan_out,), jnp.float32, -lim, lim)
    return w, b


def init_params(key, feat_dim, d_model, n_heads, num_layers, dim_ff, num_classes):
    k_cls, k_proj, k_out, k_layers = jax.random.split(key, 4)

    cls_token = 0.02 * jax.random.truncated_normal(
        k_cls, -2.0, 2.0, (1, 1, feat_dim), jnp.float32)
    proj_w, proj_b = _dense_init(k_proj, feat_dim, d_model)
    out_w, out_b = _dense_init(k_out, d_model, num_classes)

    layers = []
    for lk in jax.random.split(k_layers, num_layers):
        k1, k2, k3, k4 = jax.random.split(lk, 4)
        in_proj_w, in_proj_b = _dense_init(k1, d_model, 3 * d_model)
        out_proj_w, out_proj_b = _dense_init(k2, d_model, d_model)
        lin1_w, lin1_b = _dense_init(k3, d_model, dim_ff)
        lin2_w, lin2_b = _dense_init(k4, dim_ff, d_model)
        layers.append(dict(
            in_proj_w=in_proj_w, in_proj_b=in_proj_b,
            out_proj_w=out_proj_w, out_proj_b=out_proj_b,
            lin1_w=lin1_w, lin1_b=lin1_b,
            lin2_w=lin2_w, lin2_b=lin2_b,
            bn1_g=jnp.ones((d_model,), jnp.float32),
            bn1_b=jnp.zeros((d_model,), jnp.float32),
            bn2_g=jnp.ones((d_model,), jnp.float32),
            bn2_b=jnp.zeros((d_model,), jnp.float32),
        ))

    return dict(cls_token=cls_token, proj_w=proj_w, proj_b=proj_b,
                out_w=out_w, out_b=out_b, layers=layers)


def prepare_params(params, *, n_heads):
    """One-time host-side constant folding: fold sqrt(d_model) into the input projection
    and 1/sqrt(head_dim) into the q projection; cast matmul weights to bf16."""
    d_model = params["proj_w"].shape[1]
    hd = d_model // n_heads
    m_scale = math.sqrt(d_model)
    q_scale = 1.0 / math.sqrt(hd)

    prepared = dict(
        cls_token=params["cls_token"],
        proj_w=(params["proj_w"] * m_scale).astype(jnp.bfloat16),
        proj_b=params["proj_b"] * m_scale,
        out_w=params["out_w"].astype(jnp.bfloat16),
        out_b=params["out_b"],
        layers=[],
    )
    for p in params["layers"]:
        in_w = p["in_proj_w"].at[:, :d_model].multiply(q_scale)
        in_b = p["in_proj_b"].at[:d_model].multiply(q_scale)
        prepared["layers"].append(dict(
            in_proj_w=in_w.astype(jnp.bfloat16), in_proj_b=in_b,
            out_proj_w=p["out_proj_w"].astype(jnp.bfloat16), out_proj_b=p["out_proj_b"],
            lin1_w=p["lin1_w"].astype(jnp.bfloat16), lin1_b=p["lin1_b"],
            lin2_w=p["lin2_w"].astype(jnp.bfloat16), lin2_b=p["lin2_b"],
            bn1_g=p["bn1_g"], bn1_b=p["bn1_b"],
            bn2_g=p["bn2_g"], bn2_b=p["bn2_b"],
        ))
    return prepared


# ----------------------------- main -----------------------------

if __name__ == "__main__":
    B, T, feat_dim = 2, 8, 16
    d_model, n_heads, num_layers = 32, 4, 2
    dim_ff, num_classes = 64, 5

    key = jax.random.PRNGKey(0)
    pkey, xkey = jax.random.split(key)

    raw_params = init_params(pkey, feat_dim, d_model, n_heads, num_layers,
                             dim_ff, num_classes)
    params = prepare_params(raw_params, n_heads=n_heads)
    X = jax.random.normal(xkey, (B, T, feat_dim), jnp.float32)

    fwd = jax.jit(functools.partial(attention_classifier_forward, n_heads=n_heads))
    logits = jax.block_until_ready(fwd(params, X))

    assert logits.shape == (B, num_classes), logits.shape
    assert bool(jnp.all(jnp.isfinite(logits)))
    print("KERNEL_OK")
</pallas_src>

<mosaic_0001>
module attributes {stable_mosaic.version = 11 : i64} {
  func.func @_matmul_kernel(%arg0: i32, %arg1: i32, %arg2: i32, %arg3: memref<18x16xf32, #tpu.memory_space<vmem>>, %arg4: memref<16x32xbf16, #tpu.memory_space<vmem>>, %arg5: memref<1x32xf32, #tpu.memory_space<vmem>>, %arg6: memref<18x32xf32, #tpu.memory_space<vmem>>, %arg7: memref<18x32xf32, #tpu.memory_space<vmem>>) attributes {dimension_semantics = [#tpu.dimension_semantics<parallel>, #tpu.dimension_semantics<parallel>, #tpu.dimension_semantics<arbitrary>], iteration_bounds = array<i64: 1, 1, 1>, scalar_prefetch = 0 : i64, scratch_operands = 1 : i64, tpu.core_type = #tpu.core_type<tc>, window_params = [{transform_indices = @transform_0, window_bounds = array<i64: 18, 16>}, {transform_indices = @transform_1, window_bounds = array<i64: 16, 32>}, {transform_indices = @transform_2, window_bounds = array<i64: 1, 32>}, {transform_indices = @transform_3, window_bounds = array<i64: 18, 32>}]} {
    %c0_i32 = arith.constant 0 : i32
    %0 = arith.cmpi eq, %arg2, %c0_i32 : i32
    %1 = arith.extui %0 : i1 to i32
    %c0_i32_0 = arith.constant 0 : i32
    %2 = arith.cmpi ne, %1, %c0_i32_0 : i32
    scf.if %2 {
      %cst_10 = arith.constant 0.000000e+00 : f32
      %13 = vector.broadcast %cst_10 : f32 to vector<18x32xf32>
      %c0_11 = arith.constant 0 : index
      %c0_12 = arith.constant 0 : index
      %14 = vector.load %arg7[%c0_11, %c0_12] : memref<18x32xf32, #tpu.memory_space<vmem>>, vector<18x32xf32>
      tpu.vector_store %arg7[%c0_11, %c0_12], %13 {strides = array<i32>} : memref<18x32xf32, #tpu.memory_space<vmem>>, vector<18x32xf32>,
    } else {
    }
    %c0 = arith.constant 0 : index
    %c0_1 = arith.constant 0 : index
    %3 = vector.load %arg3[%c0, %c0_1] : memref<18x16xf32, #tpu.memory_space<vmem>>, vector<18x16xf32>
    %c0_2 = arith.constant 0 : index
    %c0_3 = arith.constant 0 : index
    %4 = vector.load %arg7[%c0_2, %c0_3] : memref<18x32xf32, #tpu.memory_space<vmem>>, vector<18x32xf32>
    %5 = arith.truncf %3 : vector<18x16xf32> to vector<18x16xbf16>
    %c0_4 = arith.constant 0 : index
    %c0_5 = arith.constant 0 : index
    %6 = vector.load %arg4[%c0_4, %c0_5] : memref<16x32xbf16, #tpu.memory_space<vmem>>, vector<16x32xbf16>
    %cst = arith.constant dense<0.000000e+00> : vector<18x32xf32>
    %7 = tpu.matmul %5, %6, %cst {dimension_numbers = #tpu.dot_dimension_numbers<[1], [0], [0], [1], [0, 0, 1, 1], [], []>} : vector<18x16xbf16>, vector<16x32xbf16>, vector<18x32xf32> -> vector<18x32xf32>
    %8 = arith.addf %4, %7 : vector<18x32xf32>
    %c0_6 = arith.constant 0 : index
    %c0_7 = arith.constant 0 : index
    %9 = vector.load %arg7[%c0_6, %c0_7] : memref<18x32xf32, #tpu.memory_space<vmem>>, vector<18x32xf32>
    tpu.vector_store %arg7[%c0_6, %c0_7], %8 {strides = array<i32>} : memref<18x32xf32, #tpu.memory_space<vmem>>, vector<18x32xf32>,
    %c0_i32_8 = arith.constant 0 : i32
    %10 = arith.cmpi eq, %arg2, %c0_i32_8 : i32
    %11 = arith.extui %10 : i1 to i32
    %c0_i32_9 = arith.constant 0 : i32
    %12 = arith.cmpi ne, %11, %c0_i32_9 : i32
    scf.if %12 {
      %c0_10 = arith.constant 0 : index
      %c0_11 = arith.constant 0 : index
      %13 = vector.load %arg7[%c0_10, %c0_11] : memref<18x32xf32, #tpu.memory_space<vmem>>, vector<18x32xf32>
      %c0_12 = arith.constant 0 : index
      %c0_13 = arith.constant 0 : index
      %14 = vector.load %arg5[%c0_12, %c0_13] : memref<1x32xf32, #tpu.memory_space<vmem>>, vector<1x32xf32>
      %15 = vector.broadcast %14 : vector<1x32xf32> to vector<18x32xf32>
      %16 = arith.addf %13, %15 : vector<18x32xf32>
      %c0_14 = arith.constant 0 : index
      %c0_15 = arith.constant 0 : index
      %17 = vector.load %arg6[%c0_14, %c0_15] : memref<18x32xf32, #tpu.memory_space<vmem>>, vector<18x32xf32>
      tpu.vector_store %arg6[%c0_14, %c0_15], %16 {strides = array<i32>} : memref<18x32xf32, #tpu.memory_space<vmem>>, vector<18x32xf32>,
    } else {
    }
    return
  }
  func.func @transform_0(%arg0: i32, %arg1: i32, %arg2: i32) -> (i32, i32) {
    %c0_i32 = arith.constant 0 : i32
    return %arg0, %arg2 : i32, i32
  }
  func.func @transform_1(%arg0: i32, %arg1: i32, %arg2: i32) -> (i32, i32) {
    %c0_i32 = arith.constant 0 : i32
    return %arg2, %arg1 : i32, i32
  }
  func.func @transform_2(%arg0: i32, %arg1: i32, %arg2: i32) -> (i32, i32) {
    %c0_i32 = arith.constant 0 : i32
    %c0_i32_0 = arith.constant 0 : i32
    return %c0_i32, %arg1 : i32, i32
  }
  func.func @transform_3(%arg0: i32, %arg1: i32, %arg2: i32) -> (i32, i32) {
    %c0_i32 = arith.constant 0 : i32
    return %arg0, %arg1 : i32, i32
  }
}

module attributes {stable_mosaic.version = 11 : i64} {
  func.func @_matmul_kernel(%arg0: i32, %arg1: i32, %arg2: i32, %arg3: memref<2x32xf32, #tpu.memory_space<vmem>>, %arg4: memref<32x5xbf16, #tpu.memory_space<vmem>>, %arg5: memref<1x5xf32, #tpu.memory_space<vmem>>, %arg6: memref<2x5xf32, #tpu.memory_space<vmem>>, %arg7: memref<2x5xf32, #tpu.memory_space<vmem>>) attributes {dimension_semantics = [#tpu.dimension_semantics<parallel>, #tpu.dimension_semantics<parallel>, #tpu.dimension_semantics<arbitrary>], iteration_bounds = array<i64: 1, 1, 1>, scalar_prefetch = 0 : i64, scratch_operands = 1 : i64, tpu.core_type = #tpu.core_type<tc>, window_params = [{transform_indices = @transform_0, window_bounds = array<i64: 2, 32>}, {transform_indices = @transform_1, window_bounds = array<i64: 32, 5>}, {transform_indices = @transform_2, window_bounds = array<i64: 1, 5>}, {transform_indices = @transform_3, window_bounds = array<i64: 2, 5>}]} {
    %c0_i32 = arith.constant 0 : i32
    %0 = arith.cmpi eq, %arg2, %c0_i32 : i32
    %1 = arith.extui %0 : i1 to i32
    %c0_i32_0 = arith.constant 0 : i32
    %2 = arith.cmpi ne, %1, %c0_i32_0 : i32
    scf.if %2 {
      %cst_26 = arith.constant 0.000000e+00 : f32
      %54 = vector.broadcast %cst_26 : f32 to vector<2x5xf32>
      %c0_27 = arith.constant 0 : index
      %c0_28 = arith.constant 0 : index
      %55 = vector.load %arg7[%c0_27, %c0_28] : memref<2x5xf32, #tpu.memory_space<vmem>>, vector<2x5xf32>
      tpu.vector_store %arg7[%c0_27, %c0_28], %54 {strides = array<i32>} : memref<2x5xf32, #tpu.memory_space<vmem>>, vector<2x5xf32>,
    } else {
    }
    %c0 = arith.constant 0 : index
    %c0_1 = arith.constant 0 : index
    %3 = vector.load %arg3[%c0, %c0_1] : memref<2x32xf32, #tpu.memory_space<vmem>>, vector<2x32xf32>
    %cst = arith.constant 5.000000e-01 : f32
    %4 = vector.broadcast %cst : f32 to vector<2x32xf32>
    %5 = arith.mulf %4, %3 : vector<2x32xf32>
    %cst_2 = arith.constant 0.707106769 : f32
    %6 = vector.broadcast %cst_2 : f32 to vector<2x32xf32>
    %7 = arith.mulf %3, %6 : vector<2x32xf32>
    %cst_3 = arith.constant 0.000000e+00 : f32
    %8 = vector.broadcast %cst_3 : f32 to vector<2x32xf32>
    %9 = arith.cmpf oge, %7, %8 : vector<2x32xf32>
    %cst_4 = arith.constant 1.000000e+00 : f32
    %cst_5 = arith.constant -1.000000e+00 : f32
    %10 = vector.broadcast %cst_4 : f32 to vector<2x32xf32>
    %11 = vector.broadcast %cst_5 : f32 to vector<2x32xf32>
    %12 = arith.select %9, %10, %11 : vector<2x32xi1>, vector<2x32xf32>
    %13 = arith.mulf %7, %12 : vector<2x32xf32>
    %cst_6 = arith.constant 0.327591091 : f32
    %14 = vector.broadcast %cst_6 : f32 to vector<2x32xf32>
    %15 = arith.mulf %14, %13 : vector<2x32xf32>
    %cst_7 = arith.constant 1.000000e+00 : f32
    %16 = vector.broadcast %cst_7 : f32 to vector<2x32xf32>
    %17 = arith.addf %16, %15 : vector<2x32xf32>
    %cst_8 = arith.constant 1.000000e+00 : f32
    %18 = vector.broadcast %cst_8 : f32 to vector<2x32xf32>
    %19 = arith.divf %18, %17 : vector<2x32xf32>
    %cst_9 = arith.constant 1.06140542 : f32
    %20 = vector.broadcast %cst_9 : f32 to vector<2x32xf32>
    %21 = arith.mulf %20, %19 : vector<2x32xf32>
    %cst_10 = arith.constant -1.45315206 : f32
    %22 = vector.broadcast %cst_10 : f32 to vector<2x32xf32>
    %23 = arith.addf %21, %22 : vector<2x32xf32>
    %24 = arith.mulf %23, %19 : vector<2x32xf32>
    %cst_11 = arith.constant 1.42141378 : f32
    %25 = vector.broadcast %cst_11 : f32 to vector<2x32xf32>
    %26 = arith.addf %24, %25 : vector<2x32xf32>
    %27 = arith.mulf %26, %19 : vector<2x32xf32>
    %cst_12 = arith.constant -0.284496725 : f32
    %28 = vector.broadcast %cst_12 : f32 to vector<2x32xf32>
    %29 = arith.addf %27, %28 : vector<2x32xf32>
    %30 = arith.mulf %29, %19 : vector<2x32xf32>
    %cst_13 = arith.constant 0.254829586 : f32
    %31 = vector.broadcast %cst_13 : f32 to vector<2x32xf32>
    %32 = arith.addf %30, %31 : vector<2x32xf32>
    %33 = arith.mulf %32, %19 : vector<2x32xf32>
    %34 = arith.mulf %13, %13 : vector<2x32xf32>
    %cst_14 = arith.constant 0.000000e+00 : f32
    %35 = vector.broadcast %cst_14 : f32 to vector<2x32xf32>
    %36 = arith.subf %35, %34 : vector<2x32xf32>
    %37 = math.exp %36 : vector<2x32xf32>
    %38 = arith.mulf %33, %37 : vector<2x32xf32>
    %cst_15 = arith.constant 1.000000e+00 : f32
    %39 = vector.broadcast %cst_15 : f32 to vector<2x32xf32>
    %40 = arith.subf %39, %38 : vector<2x32xf32>
    %41 = arith.mulf %12, %40 : vector<2x32xf32>
    %cst_16 = arith.constant 1.000000e+00 : f32
    %42 = vector.broadcast %cst_16 : f32 to vector<2x32xf32>
    %43 = arith.addf %42, %41 : vector<2x32xf32>
    %44 = arith.mulf %5, %43 : vector<2x32xf32>
    %c0_17 = arith.constant 0 : index
    %c0_18 = arith.constant 0 : index
    %45 = vector.load %arg7[%c0_17, %c0_18] : memref<2x5xf32, #tpu.memory_space<vmem>>, vector<2x5xf32>
    %46 = arith.truncf %44 : vector<2x32xf32> to vector<2x32xbf16>
    %c0_19 = arith.constant 0 : index
    %c0_20 = arith.constant 0 : index
    %47 = vector.load %arg4[%c0_19, %c0_20] : memref<32x5xbf16, #tpu.memory_space<vmem>>, vector<32x5xbf16>
    %cst_21 = arith.constant dense<0.000000e+00> : vector<2x5xf32>
    %48 = tpu.matmul %46, %47, %cst_21 {dimension_numbers = #tpu.dot_dimension_numbers<[1], [0], [0], [1], [0, 0, 1, 1], [], []>} : vector<2x32xbf16>, vector<32x5xbf16>, vector<2x5xf32> -> vector<2x5xf32>
    %49 = arith.addf %45, %48 : vector<2x5xf32>
    %c0_22 = arith.constant 0 : index
    %c0_23 = arith.constant 0 : index
    %50 = vector.load %arg7[%c0_22, %c0_23] : memref<2x5xf32, #tpu.memory_space<vmem>>, vector<2x5xf32>
    tpu.vector_store %arg7[%c0_22, %c0_23], %49 {strides = array<i32>} : memref<2x5xf32, #tpu.memory_space<vmem>>, vector<2x5xf32>,
    %c0_i32_24 = arith.constant 0 : i32
    %51 = arith.cmpi eq, %arg2, %c0_i32_24 : i32
    %52 = arith.extui %51 : i1 to i32
    %c0_i32_25 = arith.constant 0 : i32
    %53 = arith.cmpi ne, %52, %c0_i32_25 : i32
    scf.if %53 {
      %c0_26 = arith.constant 0 : index
      %c0_27 = arith.constant 0 : index
      %54 = vector.load %arg7[%c0_26, %c0_27] : memref<2x5xf32, #tpu.memory_space<vmem>>, vector<2x5xf32>
      %c0_28 = arith.constant 0 : index
      %c0_29 = arith.constant 0 : index
      %55 = vector.load %arg5[%c0_28, %c0_29] : memref<1x5xf32, #tpu.memory_space<vmem>>, vector<1x5xf32>
      %56 = vector.broadcast %55 : vector<1x5xf32> to vector<2x5xf32>
      %57 = arith.addf %54, %56 : vector<2x5xf32>
      %c0_30 = arith.constant 0 : index
      %c0_31 = arith.constant 0 : index
      %58 = vector.load %arg6[%c0_30, %c0_31] : memref<2x5xf32, #tpu.memory_space<vmem>>, vector<2x5xf32>
      tpu.vector_store %arg6[%c0_30, %c0_31], %57 {strides = array<i32>} : memref<2x5xf32, #tpu.memory_space<vmem>>, vector<2x5xf32>,
    } else {
    }
    return
  }
  func.func @transform_0(%arg0: i32, %arg1: i32, %arg2: i32) -> (i32, i32) {
    %c0_i32 = arith.constant 0 : i32
    return %arg0, %arg2 : i32, i32
  }
  func.func @transform_1(%arg0: i32, %arg1: i32, %arg2: i32) -> (i32, i32) {
    %c0_i32 = arith.constant 0 : i32
    return %arg2, %arg1 : i32, i32
  }
  func.func @transform_2(%arg0: i32, %arg1: i32, %arg2: i32) -> (i32, i32) {
    %c0_i32 = arith.constant 0 : i32
    %c0_i32_0 = arith.constant 0 : i32
    return %c0_i32, %arg1 : i32, i32
  }
  func.func @transform_3(%arg0: i32, %arg1: i32, %arg2: i32) -> (i32, i32) {
    %c0_i32 = arith.constant 0 : i32
    return %arg0, %arg1 : i32, i32
  }
}

module attributes {stable_mosaic.version = 11 : i64} {
  func.func @_encoder_layer_kernel(%arg0: memref<18x32xf32, #tpu.memory_space<vmem>>, %arg1: memref<32x96xbf16, #tpu.memory_space<vmem>>, %arg2: memref<1x96xf32, #tpu.memory_space<vmem>>, %arg3: memref<32x32xbf16, #tpu.memory_space<vmem>>, %arg4: memref<1x32xf32, #tpu.memory_space<vmem>>, %arg5: memref<1x32xf32, #tpu.memory_space<vmem>>, %arg6: memref<1x32xf32, #tpu.memory_space<vmem>>, %arg7: memref<32x64xbf16, #tpu.memory_space<vmem>>, %arg8: memref<1x64xf32, #tpu.memory_space<vmem>>, %arg9: memref<64x32xbf16, #tpu.memory_space<vmem>>, %arg10: memref<1x32xf32, #tpu.memory_space<vmem>>, %arg11: memref<1x32xf32, #tpu.memory_space<vmem>>, %arg12: memref<1x32xf32, #tpu.memory_space<vmem>>, %arg13: memref<18x32xf32, #tpu.memory_space<vmem>>) attributes {dimension_semantics = [], scalar_prefetch = 0 : i64, scratch_operands = 0 : i64, tpu.core_type = #tpu.core_type<tc>} {
    %c0 = arith.constant 0 : index
    %c0_0 = arith.constant 0 : index
    %0 = vector.load %arg0[%c0, %c0_0] : memref<18x32xf32, #tpu.memory_space<vmem>>, vector<18x32xf32>
    %1 = arith.truncf %0 : vector<18x32xf32> to vector<18x32xbf16>
    %c0_1 = arith.constant 0 : index
    %c0_2 = arith.constant 0 : index
    %2 = vector.load %arg1[%c0_1, %c0_2] : memref<32x96xbf16, #tpu.memory_space<vmem>>, vector<32x96xbf16>
    %cst = arith.constant dense<0.000000e+00> : vector<18x96xf32>
    %3 = tpu.matmul %1, %2, %cst {dimension_numbers = #tpu.dot_dimension_numbers<[1], [0], [0], [1], [0, 0, 1, 1], [], []>} : vector<18x32xbf16>, vector<32x96xbf16>, vector<18x96xf32> -> vector<18x96xf32>
    %c0_3 = arith.constant 0 : index
    %c0_4 = arith.constant 0 : index
    %4 = vector.load %arg2[%c0_3, %c0_4] : memref<1x96xf32, #tpu.memory_space<vmem>>, vector<1x96xf32>
    %5 = vector.broadcast %4 : vector<1x96xf32> to vector<18x96xf32>
    %6 = arith.addf %3, %5 : vector<18x96xf32>
    %7 = vector.extract_strided_slice %6 {offsets = [0, 0], sizes = [9, 96], strides = [1, 1]} : vector<18x96xf32> to vector<9x96xf32>
    %8 = vector.extract_strided_slice %7 {offsets = [0, 0], sizes = [9, 8], strides = [1, 1]} : vector<9x96xf32> to vector<9x8xf32>
    %9 = arith.truncf %8 : vector<9x8xf32> to vector<9x8xbf16>
    %10 = vector.extract_strided_slice %7 {offsets = [0, 32], sizes = [9, 8], strides = [1, 1]} : vector<9x96xf32> to vector<9x8xf32>
    %11 = arith.truncf %10 : vector<9x8xf32> to vector<9x8xbf16>
    %12 = vector.extract_strided_slice %7 {offsets = [0, 64], sizes = [9, 8], strides = [1, 1]} : vector<9x96xf32> to vector<9x8xf32>
    %13 = arith.truncf %12 : vector<9x8xf32> to vector<9x8xbf16>
    %cst_5 = arith.constant dense<0.000000e+00> : vector<9x9xf32>
    %14 = tpu.matmul %9, %11, %cst_5 {dimension_numbers = #tpu.dot_dimension_numbers<[1], [1], [0], [0], [0, 0, 1, 0], [], []>} : vector<9x8xbf16>, vector<9x8xbf16>, vector<9x9xf32> -> vector<9x9xf32>
    %cst_6 = arith.constant dense<0xFF800000> : vector<9xf32>
    %15 = vector.multi_reduction <maximumf>, %14, %cst_6 [1] : vector<9x9xf32> to vector<9xf32>
    %16 = vector.shape_cast %15 : vector<9xf32> to vector<9x1xf32>
    %17 = vector.broadcast %16 : vector<9x1xf32> to vector<9x9xf32>
    %18 = arith.subf %14, %17 : vector<9x9xf32>
    %19 = math.exp %18 : vector<9x9xf32>
    %cst_7 = arith.constant dense<0.000000e+00> : vector<9xf32>
    %20 = vector.multi_reduction <add>, %19, %cst_7 [1] : vector<9x9xf32> to vector<9xf32>
    %21 = vector.shape_cast %20 : vector<9xf32> to vector<9x1xf32>
    %22 = tpu.reciprocal %21 {approx = true} : vector<9x1xf32> -> vector<9x1xf32>
    %23 = vector.broadcast %22 : vector<9x1xf32> to vector<9x9xf32>
    %24 = arith.mulf %19, %23 : vector<9x9xf32>
    %25 = arith.truncf %24 : vector<9x9xf32> to vector<9x9xbf16>
    %cst_8 = arith.constant dense<0.000000e+00> : vector<9x8xf32>
    %26 = tpu.matmul %25, %13, %cst_8 {dimension_numbers = #tpu.dot_dimension_numbers<[1], [0], [0], [1], [0, 0, 1, 1], [], []>} : vector<9x9xbf16>, vector<9x8xbf16>, vector<9x8xf32> -> vector<9x8xf32>
    %27 = vector.extract_strided_slice %7 {offsets = [0, 8], sizes = [9, 8], strides = [1, 1]} : vector<9x96xf32> to vector<9x8xf32>
    %28 = arith.truncf %27 : vector<9x8xf32> to vector<9x8xbf16>
    %29 = vector.extract_strided_slice %7 {offsets = [0, 40], sizes = [9, 8], strides = [1, 1]} : vector<9x96xf32> to vector<9x8xf32>
    %30 = arith.truncf %29 : vector<9x8xf32> to vector<9x8xbf16>
    %31 = vector.extract_strided_slice %7 {offsets = [0, 72], sizes = [9, 8], strides = [1, 1]} : vector<9x96xf32> to vector<9x8xf32>
    %32 = arith.truncf %31 : vector<9x8xf32> to vector<9x8xbf16>
    %cst_9 = arith.constant dense<0.000000e+00> : vector<9x9xf32>
    %33 = tpu.matmul %28, %30, %cst_9 {dimension_numbers = #tpu.dot_dimension_numbers<[1], [1], [0], [0], [0, 0, 1, 0], [], []>} : vector<9x8xbf16>, vector<9x8xbf16>, vector<9x9xf32> -> vector<9x9xf32>
    %cst_10 = arith.constant dense<0xFF800000> : vector<9xf32>
    %34 = vector.multi_reduction <maximumf>, %33, %cst_10 [1] : vector<9x9xf32> to vector<9xf32>
    %35 = vector.shape_cast %34 : vector<9xf32> to vector<9x1xf32>
    %36 = vector.broadcast %35 : vector<9x1xf32> to vector<9x9xf32>
    %37 = arith.subf %33, %36 : vector<9x9xf32>
    %38 = math.exp %37 : vector<9x9xf32>
    %cst_11 = arith.constant dense<0.000000e+00> : vector<9xf32>
    %39 = vector.multi_reduction <add>, %38, %cst_11 [1] : vector<9x9xf32> to vector<9xf32>
    %40 = vector.shape_cast %39 : vector<9xf32> to vector<9x1xf32>
    %41 = tpu.reciprocal %40 {approx = true} : vector<9x1xf32> -> vector<9x1xf32>
    %42 = vector.broadcast %41 : vector<9x1xf32> to vector<9x9xf32>
    %43 = arith.mulf %38, %42 : vector<9x9xf32>
    %44 = arith.truncf %43 : vector<9x9xf32> to vector<9x9xbf16>
    %cst_12 = arith.constant dense<0.000000e+00> : vector<9x8xf32>
    %45 = tpu.matmul %44, %32, %cst_12 {dimension_numbers = #tpu.dot_dimension_numbers<[1], [0], [0], [1], [0, 0, 1, 1], [], []>} : vector<9x9xbf16>, vector<9x8xbf16>, vector<9x8xf32> -> vector<9x8xf32>
    %46 = vector.extract_strided_slice %7 {offsets = [0, 16], sizes = [9, 8], strides = [1, 1]} : vector<9x96xf32> to vector<9x8xf32>
    %47 = arith.truncf %46 : vector<9x8xf32> to vector<9x8xbf16>
    %48 = vector.extract_strided_slice %7 {offsets = [0, 48], sizes = [9, 8], strides = [1, 1]} : vector<9x96xf32> to vector<9x8xf32>
    %49 = arith.truncf %48 : vector<9x8xf32> to vector<9x8xbf16>
    %50 = vector.extract_strided_slice %7 {offsets = [0, 80], sizes = [9, 8], strides = [1, 1]} : vector<9x96xf32> to vector<9x8xf32>
    %51 = arith.truncf %50 : vector<9x8xf32> to vector<9x8xbf16>
    %cst_13 = arith.constant dense<0.000000e+00> : vector<9x9xf32>
    %52 = tpu.matmul %47, %49, %cst_13 {dimension_numbers = #tpu.dot_dimension_numbers<[1], [1], [0], [0], [0, 0, 1, 0], [], []>} : vector<9x8xbf16>, vector<9x8xbf16>, vector<9x9xf32> -> vector<9x9xf32>
    %cst_14 = arith.constant dense<0xFF800000> : vector<9xf32>
    %53 = vector.multi_reduction <maximumf>, %52, %cst_14 [1] : vector<9x9xf32> to vector<9xf32>
    %54 = vector.shape_cast %53 : vector<9xf32> to vector<9x1xf32>
    %55 = vector.broadcast %54 : vector<9x1xf32> to vector<9x9xf32>
    %56 = arith.subf %52, %55 : vector<9x9xf32>
    %57 = math.exp %56 : vector<9x9xf32>
    %cst_15 = arith.constant dense<0.000000e+00> : vector<9xf32>
    %58 = vector.multi_reduction <add>, %57, %cst_15 [1] : vector<9x9xf32> to vector<9xf32>
    %59 = vector.shape_cast %58 : vector<9xf32> to vector<9x1xf32>
    %60 = tpu.reciprocal %59 {approx = true} : vector<9x1xf32> -> vector<9x1xf32>
    %61 = vector.broadcast %60 : vector<9x1xf32> to vector<9x9xf32>
    %62 = arith.mulf %57, %61 : vector<9x9xf32>
    %63 = arith.truncf %62 : vector<9x9xf32> to vector<9x9xbf16>
    %cst_16 = arith.constant dense<0.000000e+00> : vector<9x8xf32>
    %64 = tpu.matmul %63, %51, %cst_16 {dimension_numbers = #tpu.dot_dimension_numbers<[1], [0], [0], [1], [0, 0, 1, 1], [], []>} : vector<9x9xbf16>, vector<9x8xbf16>, vector<9x8xf32> -> vector<9x8xf32>
    %65 = vector.extract_strided_slice %7 {offsets = [0, 24], sizes = [9, 8], strides = [1, 1]} : vector<9x96xf32> to vector<9x8xf32>
    %66 = arith.truncf %65 : vector<9x8xf32> to vector<9x8xbf16>
    %67 = vector.extract_strided_slice %7 {offsets = [0, 56], sizes = [9, 8], strides = [1, 1]} : vector<9x96xf32> to vector<9x8xf32>
    %68 = arith.truncf %67 : vector<9x8xf32> to vector<9x8xbf16>
    %69 = vector.extract_strided_slice %7 {offsets = [0, 88], sizes = [9, 8], strides = [1, 1]} : vector<9x96xf32> to vector<9x8xf32>
    %70 = arith.truncf %69 : vector<9x8xf32> to vector<9x8xbf16>
    %cst_17 = arith.constant dense<0.000000e+00> : vector<9x9xf32>
    %71 = tpu.matmul %66, %68, %cst_17 {dimension_numbers = #tpu.dot_dimension_numbers<[1], [1], [0], [0], [0, 0, 1, 0], [], []>} : vector<9x8xbf16>, vector<9x8xbf16>, vector<9x9xf32> -> vector<9x9xf32>
    %cst_18 = arith.constant dense<0xFF800000> : vector<9xf32>
    %72 = vector.multi_reduction <maximumf>, %71, %cst_18 [1] : vector<9x9xf32> to vector<9xf32>
    %73 = vector.shape_cast %72 : vector<9xf32> to vector<9x1xf32>
    %74 = vector.broadcast %73 : vector<9x1xf32> to vector<9x9xf32>
    %75 = arith.subf %71, %74 : vector<9x9xf32>
    %76 = math.exp %75 : vector<9x9xf32>
    %cst_19 = arith.constant dense<0.000000e+00> : vector<9xf32>
    %77 = vector.multi_reduction <add>, %76, %cst_19 [1] : vector<9x9xf32> to vector<9xf32>
    %78 = vector.shape_cast %77 : vector<9xf32> to vector<9x1xf32>
    %79 = tpu.reciprocal %78 {approx = true} : vector<9x1xf32> -> vector<9x1xf32>
    %80 = vector.broadcast %79 : vector<9x1xf32> to vector<9x9xf32>
    %81 = arith.mulf %76, %80 : vector<9x9xf32>
    %82 = arith.truncf %81 : vector<9x9xf32> to vector<9x9xbf16>
    %cst_20 = arith.constant dense<0.000000e+00> : vector<9x8xf32>
    %83 = tpu.matmul %82, %70, %cst_20 {dimension_numbers = #tpu.dot_dimension_numbers<[1], [0], [0], [1], [0, 0, 1, 1], [], []>} : vector<9x9xbf16>, vector<9x8xbf16>, vector<9x8xf32> -> vector<9x8xf32>
    %84 = tpu.concatenate %26, %45, %64, %83 in 1 : vector<9x8xf32>, vector<9x8xf32>, vector<9x8xf32>, vector<9x8xf32> -> vector<9x32xf32>
    %85 = vector.extract_strided_slice %6 {offsets = [9, 0], sizes = [9, 96], strides = [1, 1]} : vector<18x96xf32> to vector<9x96xf32>
    %86 = vector.extract_strided_slice %85 {offsets = [0, 0], sizes = [9, 8], strides = [1, 1]} : vector<9x96xf32> to vector<9x8xf32>
    %87 = arith.truncf %86 : vector<9x8xf32> to vector<9x8xbf16>
    %88 = vector.extract_strided_slice %85 {offsets = [0, 32], sizes = [9, 8], strides = [1, 1]} : vector<9x96xf32> to vector<9x8xf32>
    %89 = arith.truncf %88 : vector<9x8xf32> to vector<9x8xbf16>
    %90 = vector.extract_strided_slice %85 {offsets = [0, 64], sizes = [9, 8], strides = [1, 1]} : vector<9x96xf32> to vector<9x8xf32>
    %91 = arith.truncf %90 : vector<9x8xf32> to vector<9x8xbf16>
    %cst_21 = arith.constant dense<0.000000e+00> : vector<9x9xf32>
    %92 = tpu.matmul %87, %89, %cst_21 {dimension_numbers = #tpu.dot_dimension_numbers<[1], [1], [0], [0], [0, 0, 1, 0], [], []>} : vector<9x8xbf16>, vector<9x8xbf16>, vector<9x9xf32> -> vector<9x9xf32>
    %cst_22 = arith.constant dense<0xFF800000> : vector<9xf32>
    %93 = vector.multi_reduction <maximumf>, %92, %cst_22 [1] : vector<9x9xf32> to vector<9xf32>
    %94 = vector.shape_cast %93 : vector<9xf32> to vector<9x1xf32>
    %95 = vector.broadcast %94 : vector<9x1xf32> to vector<9x9xf32>
    %96 = arith.subf %92, %95 : vector<9x9xf32>
    %97 = math.exp %96 : vector<9x9xf32>
    %cst_23 = arith.constant dense<0.000000e+00> : vector<9xf32>
    %98 = vector.multi_reduction <add>, %97, %cst_23 [1] : vector<9x9xf32> to vector<9xf32>
    %99 = vector.shape_cast %98 : vector<9xf32> to vector<9x1xf32>
    %100 = tpu.reciprocal %99 {approx = true} : vector<9x1xf32> -> vector<9x1xf32>
    %101 = vector.broadcast %100 : vector<9x1xf32> to vector<9x9xf32>
    %102 = arith.mulf %97, %101 : vector<9x9xf32>
    %103 = arith.truncf %102 : vector<9x9xf32> to vector<9x9xbf16>
    %cst_24 = arith.constant dense<0.000000e+00> : vector<9x8xf32>
    %104 = tpu.matmul %103, %91, %cst_24 {dimension_numbers = #tpu.dot_dimension_numbers<[1], [0], [0], [1], [0, 0, 1, 1], [], []>} : vector<9x9xbf16>, vector<9x8xbf16>, vector<9x8xf32> -> vector<9x8xf32>
    %105 = vector.extract_strided_slice %85 {offsets = [0, 8], sizes = [9, 8], strides = [1, 1]} : vector<9x96xf32> to vector<9x8xf32>
    %106 = arith.truncf %105 : vector<9x8xf32> to vector<9x8xbf16>
    %107 = vector.extract_strided_slice %85 {offsets = [0, 40], sizes = [9, 8], strides = [1, 1]} : vector<9x96xf32> to vector<9x8xf32>
    %108 = arith.truncf %107 : vector<9x8xf32> to vector<9x8xbf16>
    %109 = vector.extract_strided_slice %85 {offsets = [0, 72], sizes = [9, 8], strides = [1, 1]} : vector<9x96xf32> to vector<9x8xf32>
    %110 = arith.truncf %109 : vector<9x8xf32> to vector<9x8xbf16>
    %cst_25 = arith.constant dense<0.000000e+00> : vector<9x9xf32>
    %111 = tpu.matmul %106, %108, %cst_25 {dimension_numbers = #tpu.dot_dimension_numbers<[1], [1], [0], [0], [0, 0, 1, 0], [], []>} : vector<9x8xbf16>, vector<9x8xbf16>, vector<9x9xf32> -> vector<9x9xf32>
    %cst_26 = arith.constant dense<0xFF800000> : vector<9xf32>
    %112 = vector.multi_reduction <maximumf>, %111, %cst_26 [1] : vector<9x9xf32> to vector<9xf32>
    %113 = vector.shape_cast %112 : vector<9xf32> to vector<9x1xf32>
    %114 = vector.broadcast %113 : vector<9x1xf32> to vector<9x9xf32>
    %115 = arith.subf %111, %114 : vector<9x9xf32>
    %116 = math.exp %115 : vector<9x9xf32>
    %cst_27 = arith.constant dense<0.000000e+00> : vector<9xf32>
    %117 = vector.multi_reduction <add>, %116, %cst_27 [1] : vector<9x9xf32> to vector<9xf32>
    %118 = vector.shape_cast %117 : vector<9xf32> to vector<9x1xf32>
    %119 = tpu.reciprocal %118 {approx = true} : vector<9x1xf32> -> vector<9x1xf32>
    %120 = vector.broadcast %119 : vector<9x1xf32> to vector<9x9xf32>
    %121 = arith.mulf %116, %120 : vector<9x9xf32>
    %122 = arith.truncf %121 : vector<9x9xf32> to vector<9x9xbf16>
    %cst_28 = arith.constant dense<0.000000e+00> : vector<9x8xf32>
    %123 = tpu.matmul %122, %110, %cst_28 {dimension_numbers = #tpu.dot_dimension_numbers<[1], [0], [0], [1], [0, 0, 1, 1], [], []>} : vector<9x9xbf16>, vector<9x8xbf16>, vector<9x8xf32> -> vector<9x8xf32>
    %124 = vector.extract_strided_slice %85 {offsets = [0, 16], sizes = [9, 8], strides = [1, 1]} : vector<9x96xf32> to vector<9x8xf32>
    %125 = arith.truncf %124 : vector<9x8xf32> to vector<9x8xbf16>
    %126 = vector.extract_strided_slice %85 {offsets = [0, 48], sizes = [9, 8], strides = [1, 1]} : vector<9x96xf32> to vector<9x8xf32>
    %127 = arith.truncf %126 : vector<9x8xf32> to vector<9x8xbf16>
    %128 = vector.extract_strided_slice %85 {offsets = [0, 80], sizes = [9, 8], strides = [1, 1]} : vector<9x96xf32> to vector<9x8xf32>
    %129 = arith.truncf %128 : vector<9x8xf32> to vector<9x8xbf16>
    %cst_29 = arith.constant dense<0.000000e+00> : vector<9x9xf32>
    %130 = tpu.matmul %125, %127, %cst_29 {dimension_numbers = #tpu.dot_dimension_numbers<[1], [1], [0], [0], [0, 0, 1, 0], [], []>} : vector<9x8xbf16>, vector<9x8xbf16>, vector<9x9xf32> -> vector<9x9xf32>
    %cst_30 = arith.constant dense<0xFF800000> : vector<9xf32>
    %131 = vector.multi_reduction <maximumf>, %130, %cst_30 [1] : vector<9x9xf32> to vector<9xf32>
    %132 = vector.shape_cast %131 : vector<9xf32> to vector<9x1xf32>
    %133 = vector.broadcast %132 : vector<9x1xf32> to vector<9x9xf32>
    %134 = arith.subf %130, %133 : vector<9x9xf32>
    %135 = math.exp %134 : vector<9x9xf32>
    %cst_31 = arith.constant dense<0.000000e+00> : vector<9xf32>
    %136 = vector.multi_reduction <add>, %135, %cst_31 [1] : vector<9x9xf32> to vector<9xf32>
    %137 = vector.shape_cast %136 : vector<9xf32> to vector<9x1xf32>
    %138 = tpu.reciprocal %137 {approx = true} : vector<9x1xf32> -> vector<9x1xf32>
    %139 = vector.broadcast %138 : vector<9x1xf32> to vector<9x9xf32>
    %140 = arith.mulf %135, %139 : vector<9x9xf32>
    %141 = arith.truncf %140 : vector<9x9xf32> to vector<9x9xbf16>
    %cst_32 = arith.constant dense<0.000000e+00> : vector<9x8xf32>
    %142 = tpu.matmul %141, %129, %cst_32 {dimension_numbers = #tpu.dot_dimension_numbers<[1], [0], [0], [1], [0, 0, 1, 1], [], []>} : vector<9x9xbf16>, vector<9x8xbf16>, vector<9x8xf32> -> vector<9x8xf32>
    %143 = vector.extract_strided_slice %85 {offsets = [0, 24], sizes = [9, 8], strides = [1, 1]} : vector<9x96xf32> to vector<9x8xf32>
    %144 = arith.truncf %143 : vector<9x8xf32> to vector<9x8xbf16>
    %145 = vector.extract_strided_slice %85 {offsets = [0, 56], sizes = [9, 8], strides = [1, 1]} : vector<9x96xf32> to vector<9x8xf32>
    %146 = arith.truncf %145 : vector<9x8xf32> to vector<9x8xbf16>
    %147 = vector.extract_strided_slice %85 {offsets = [0, 88], sizes = [9, 8], strides = [1, 1]} : vector<9x96xf32> to vector<9x8xf32>
    %148 = arith.truncf %147 : vector<9x8xf32> to vector<9x8xbf16>
    %cst_33 = arith.constant dense<0.000000e+00> : vector<9x9xf32>
    %149 = tpu.matmul %144, %146, %cst_33 {dimension_numbers = #tpu.dot_dimension_numbers<[1], [1], [0], [0], [0, 0, 1, 0], [], []>} : vector<9x8xbf16>, vector<9x8xbf16>, vector<9x9xf32> -> vector<9x9xf32>
    %cst_34 = arith.constant dense<0xFF800000> : vector<9xf32>
    %150 = vector.multi_reduction <maximumf>, %149, %cst_34 [1] : vector<9x9xf32> to vector<9xf32>
    %151 = vector.shape_cast %150 : vector<9xf32> to vector<9x1xf32>
    %152 = vector.broadcast %151 : vector<9x1xf32> to vector<9x9xf32>
    %153 = arith.subf %149, %152 : vector<9x9xf32>
    %154 = math.exp %153 : vector<9x9xf32>
    %cst_35 = arith.constant dense<0.000000e+00> : vector<9xf32>
    %155 = vector.multi_reduction <add>, %154, %cst_35 [1] : vector<9x9xf32> to vector<9xf32>
    %156 = vector.shape_cast %155 : vector<9xf32> to vector<9x1xf32>
    %157 = tpu.reciprocal %156 {approx = true} : vector<9x1xf32> -> vector<9x1xf32>
    %158 = vector.broadcast %157 : vector<9x1xf32> to vector<9x9xf32>
    %159 = arith.mulf %154, %158 : vector<9x9xf32>
    %160 = arith.truncf %159 : vector<9x9xf32> to vector<9x9xbf16>
    %cst_36 = arith.constant dense<0.000000e+00> : vector<9x8xf32>
    %161 = tpu.matmul %160, %148, %cst_36 {dimension_numbers = #tpu.dot_dimension_numbers<[1], [0], [0], [1], [0, 0, 1, 1], [], []>} : vector<9x9xbf16>, vector<9x8xbf16>, vector<9x8xf32> -> vector<9x8xf32>
    %162 = tpu.concatenate %104, %123, %142, %161 in 1 : vector<9x8xf32>, vector<9x8xf32>, vector<9x8xf32>, vector<9x8xf32> -> vector<9x32xf32>
    %163 = tpu.concatenate %84, %162 in 0 : vector<9x32xf32>, vector<9x32xf32> -> vector<18x32xf32>
    %164 = arith.truncf %163 : vector<18x32xf32> to vector<18x32xbf16>
    %c0_37 = arith.constant 0 : index
    %c0_38 = arith.constant 0 : index
    %165 = vector.load %arg3[%c0_37, %c0_38] : memref<32x32xbf16, #tpu.memory_space<vmem>>, vector<32x32xbf16>
    %cst_39 = arith.constant dense<0.000000e+00> : vector<18x32xf32>
    %166 = tpu.matmul %164, %165, %cst_39 {dimension_numbers = #tpu.dot_dimension_numbers<[1], [0], [0], [1], [0, 0, 1, 1], [], []>} : vector<18x32xbf16>, vector<32x32xbf16>, vector<18x32xf32> -> vector<18x32xf32>
    %c0_40 = arith.constant 0 : index
    %c0_41 = arith.constant 0 : index
    %167 = vector.load %arg4[%c0_40, %c0_41] : memref<1x32xf32, #tpu.memory_space<vmem>>, vector<1x32xf32>
    %168 = vector.broadcast %167 : vector<1x32xf32> to vector<18x32xf32>
    %169 = arith.addf %166, %168 : vector<18x32xf32>
    %170 = arith.addf %0, %169 : vector<18x32xf32>
    %cst_42 = arith.constant dense<0.000000e+00> : vector<32xf32>
    %171 = vector.multi_reduction <add>, %170, %cst_42 [0] : vector<18x32xf32> to vector<32xf32>
    %172 = vector.shape_cast %171 : vector<32xf32> to vector<1x32xf32>
    %cst_43 = arith.constant 1.800000e+01 : f32
    %173 = vector.broadcast %cst_43 : f32 to vector<1x32xf32>
    %174 = arith.divf %172, %173 : vector<1x32xf32>
    %175 = vector.broadcast %174 : vector<1x32xf32> to vector<18x32xf32>
    %176 = arith.subf %170, %175 : vector<18x32xf32>
    %177 = arith.mulf %176, %176 : vector<18x32xf32>
    %cst_44 = arith.constant dense<0.000000e+00> : vector<32xf32>
    %178 = vector.multi_reduction <add>, %177, %cst_44 [0] : vector<18x32xf32> to vector<32xf32>
    %179 = vector.shape_cast %178 : vector<32xf32> to vector<1x32xf32>
    %cst_45 = arith.constant 1.800000e+01 : f32
    %180 = vector.broadcast %cst_45 : f32 to vector<1x32xf32>
    %181 = arith.divf %179, %180 : vector<1x32xf32>
    %182 = vector.broadcast %174 : vector<1x32xf32> to vector<18x32xf32>
    %183 = arith.subf %170, %182 : vector<18x32xf32>
    %cst_46 = arith.constant 9.99999974E-6 : f32
    %184 = vector.broadcast %cst_46 : f32 to vector<1x32xf32>
    %185 = arith.addf %181, %184 : vector<1x32xf32>
    %186 = math.rsqrt %185 : vector<1x32xf32>
    %187 = vector.broadcast %186 : vector<1x32xf32> to vector<18x32xf32>
    %188 = arith.mulf %183, %187 : vector<18x32xf32>
    %c0_47 = arith.constant 0 : index
    %c0_48 = arith.constant 0 : index
    %189 = vector.load %arg5[%c0_47, %c0_48] : memref<1x32xf32, #tpu.memory_space<vmem>>, vector<1x32xf32>
    %190 = vector.broadcast %189 : vector<1x32xf32> to vector<18x32xf32>
    %191 = arith.mulf %188, %190 : vector<18x32xf32>
    %c0_49 = arith.constant 0 : index
    %c0_50 = arith.constant 0 : index
    %192 = vector.load %arg6[%c0_49, %c0_50] : memref<1x32xf32, #tpu.memory_space<vmem>>, vector<1x32xf32>
    %193 = vector.broadcast %192 : vector<1x32xf32> to vector<18x32xf32>
    %194 = arith.addf %191, %193 : vector<18x32xf32>
    %195 = arith.truncf %194 : vector<18x32xf32> to vector<18x32xbf16>
    %c0_51 = arith.constant 0 : index
    %c0_52 = arith.constant 0 : index
    %196 = vector.load %arg7[%c0_51, %c0_52] : memref<32x64xbf16, #tpu.memory_space<vmem>>, vector<32x64xbf16>
    %cst_53 = arith.constant dense<0.000000e+00> : vector<18x64xf32>
    %197 = tpu.matmul %195, %196, %cst_53 {dimension_numbers = #tpu.dot_dimension_numbers<[1], [0], [0], [1], [0, 0, 1, 1], [], []>} : vector<18x32xbf16>, vector<32x64xbf16>, vector<18x64xf32> -> vector<18x64xf32>
    %c0_54 = arith.constant 0 : index
    %c0_55 = arith.constant 0 : index
    %198 = vector.load %arg8[%c0_54, %c0_55] : memref<1x64xf32, #tpu.memory_space<vmem>>, vector<1x64xf32>
    %199 = vector.broadcast %198 : vector<1x64xf32> to vector<18x64xf32>
    %200 = arith.addf %197, %199 : vector<18x64xf32>
    %cst_56 = arith.constant 5.000000e-01 : f32
    %201 = vector.broadcast %cst_56 : f32 to vector<18x64xf32>
    %202 = arith.mulf %201, %200 : vector<18x64xf32>
    %cst_57 = arith.constant 0.707106769 : f32
    %203 = vector.broadcast %cst_57 : f32 to vector<18x64xf32>
    %204 = arith.mulf %200, %203 : vector<18x64xf32>
    %cst_58 = arith.constant 0.000000e+00 : f32
    %205 = vector.broadcast %cst_58 : f32 to vector<18x64xf32>
    %206 = arith.cmpf oge, %204, %205 : vector<18x64xf32>
    %cst_59 = arith.constant 1.000000e+00 : f32
    %cst_60 = arith.constant -1.000000e+00 : f32
    %207 = vector.broadcast %cst_59 : f32 to vector<18x64xf32>
    %208 = vector.broadcast %cst_60 : f32 to vector<18x64xf32>
    %209 = arith.select %206, %207, %208 : vector<18x64xi1>, vector<18x64xf32>
    %210 = arith.mulf %204, %209 : vector<18x64xf32>
    %cst_61 = arith.constant 0.327591091 : f32
    %211 = vector.broadcast %cst_61 : f32 to vector<18x64xf32>
    %212 = arith.mulf %211, %210 : vector<18x64xf32>
    %cst_62 = arith.constant 1.000000e+00 : f32
    %213 = vector.broadcast %cst_62 : f32 to vector<18x64xf32>
    %214 = arith.addf %213, %212 : vector<18x64xf32>
    %cst_63 = arith.constant 1.000000e+00 : f32
    %215 = vector.broadcast %cst_63 : f32 to vector<18x64xf32>
    %216 = arith.divf %215, %214 : vector<18x64xf32>
    %cst_64 = arith.constant 1.06140542 : f32
    %217 = vector.broadcast %cst_64 : f32 to vector<18x64xf32>
    %218 = arith.mulf %217, %216 : vector<18x64xf32>
    %cst_65 = arith.constant -1.45315206 : f32
    %219 = vector.broadcast %cst_65 : f32 to vector<18x64xf32>
    %220 = arith.addf %218, %219 : vector<18x64xf32>
    %221 = arith.mulf %220, %216 : vector<18x64xf32>
    %cst_66 = arith.constant 1.42141378 : f32
    %222 = vector.broadcast %cst_66 : f32 to vector<18x64xf32>
    %223 = arith.addf %221, %222 : vector<18x64xf32>
    %224 = arith.mulf %223, %216 : vector<18x64xf32>
    %cst_67 = arith.constant -0.284496725 : f32
    %225 = vector.broadcast %cst_67 : f32 to vector<18x64xf32>
    %226 = arith.addf %224, %225 : vector<18x64xf32>
    %227 = arith.mulf %226, %216 : vector<18x64xf32>
    %cst_68 = arith.constant 0.254829586 : f32
    %228 = vector.broadcast %cst_68 : f32 to vector<18x64xf32>
    %229 = arith.addf %227, %228 : vector<18x64xf32>
    %230 = arith.mulf %229, %216 : vector<18x64xf32>
    %231 = arith.mulf %210, %210 : vector<18x64xf32>
    %cst_69 = arith.constant 0.000000e+00 : f32
    %232 = vector.broadcast %cst_69 : f32 to vector<18x64xf32>
    %233 = arith.subf %232, %231 : vector<18x64xf32>
    %234 = math.exp %233 : vector<18x64xf32>
    %235 = arith.mulf %230, %234 : vector<18x64xf32>
    %cst_70 = arith.constant 1.000000e+00 : f32
    %236 = vector.broadcast %cst_70 : f32 to vector<18x64xf32>
    %237 = arith.subf %236, %235 : vector<18x64xf32>
    %238 = arith.mulf %209, %237 : vector<18x64xf32>
    %cst_71 = arith.constant 1.000000e+00 : f32
    %239 = vector.broadcast %cst_71 : f32 to vector<18x64xf32>
    %240 = arith.addf %239, %238 : vector<18x64xf32>
    %241 = arith.mulf %202, %240 : vector<18x64xf32>
    %242 = arith.truncf %241 : vector<18x64xf32> to vector<18x64xbf16>
    %c0_72 = arith.constant 0 : index
    %c0_73 = arith.constant 0 : index
    %243 = vector.load %arg9[%c0_72, %c0_73] : memref<64x32xbf16, #tpu.memory_space<vmem>>, vector<64x32xbf16>
    %cst_74 = arith.constant dense<0.000000e+00> : vector<18x32xf32>
    %244 = tpu.matmul %242, %243, %cst_74 {dimension_numbers = #tpu.dot_dimension_numbers<[1], [0], [0], [1], [0, 0, 1, 1], [], []>} : vector<18x64xbf16>, vector<64x32xbf16>, vector<18x32xf32> -> vector<18x32xf32>
    %c0_75 = arith.constant 0 : index
    %c0_76 = arith.constant 0 : index
    %245 = vector.load %arg10[%c0_75, %c0_76] : memref<1x32xf32, #tpu.memory_space<vmem>>, vector<1x32xf32>
    %246 = vector.broadcast %245 : vector<1x32xf32> to vector<18x32xf32>
    %247 = arith.addf %244, %246 : vector<18x32xf32>
    %248 = arith.addf %194, %247 : vector<18x32xf32>
    %cst_77 = arith.constant dense<0.000000e+00> : vector<32xf32>
    %249 = vector.multi_reduction <add>, %248, %cst_77 [0] : vector<18x32xf32> to vector<32xf32>
    %250 = vector.shape_cast %249 : vector<32xf32> to vector<1x32xf32>
    %cst_78 = arith.constant 1.800000e+01 : f32
    %251 = vector.broadcast %cst_78 : f32 to vector<1x32xf32>
    %252 = arith.divf %250, %251 : vector<1x32xf32>
    %253 = vector.broadcast %252 : vector<1x32xf32> to vector<18x32xf32>
    %254 = arith.subf %248, %253 : vector<18x32xf32>
    %255 = arith.mulf %254, %254 : vector<18x32xf32>
    %cst_79 = arith.constant dense<0.000000e+00> : vector<32xf32>
    %256 = vector.multi_reduction <add>, %255, %cst_79 [0] : vector<18x32xf32> to vector<32xf32>
    %257 = vector.shape_cast %256 : vector<32xf32> to vector<1x32xf32>
    %cst_80 = arith.constant 1.800000e+01 : f32
    %258 = vector.broadcast %cst_80 : f32 to vector<1x32xf32>
    %259 = arith.divf %257, %258 : vector<1x32xf32>
    %260 = vector.broadcast %252 : vector<1x32xf32> to vector<18x32xf32>
    %261 = arith.subf %248, %260 : vector<18x32xf32>
    %cst_81 = arith.constant 9.99999974E-6 : f32
    %262 = vector.broadcast %cst_81 : f32 to vector<1x32xf32>
    %263 = arith.addf %259, %262 : vector<1x32xf32>
    %264 = math.rsqrt %263 : vector<1x32xf32>
    %265 = vector.broadcast %264 : vector<1x32xf32> to vector<18x32xf32>
    %266 = arith.mulf %261, %265 : vector<18x32xf32>
    %c0_82 = arith.constant 0 : index
    %c0_83 = arith.constant 0 : index
    %267 = vector.load %arg11[%c0_82, %c0_83] : memref<1x32xf32, #tpu.memory_space<vmem>>, vector<1x32xf32>
    %268 = vector.broadcast %267 : vector<1x32xf32> to vector<18x32xf32>
    %269 = arith.mulf %266, %268 : vector<18x32xf32>
    %c0_84 = arith.constant 0 : index
    %c0_85 = arith.constant 0 : index
    %270 = vector.load %arg12[%c0_84, %c0_85] : memref<1x32xf32, #tpu.memory_space<vmem>>, vector<1x32xf32>
    %271 = vector.broadcast %270 : vector<1x32xf32> to vector<18x32xf32>
    %272 = arith.addf %269, %271 : vector<18x32xf32>
    %c0_86 = arith.constant 0 : index
    %c0_87 = arith.constant 0 : index
    %273 = vector.load %arg13[%c0_86, %c0_87] : memref<18x32xf32, #tpu.memory_space<vmem>>, vector<18x32xf32>
    tpu.vector_store %arg13[%c0_86, %c0_87], %272 {strides = array<i32>} : memref<18x32xf32, #tpu.memory_space<vmem>>, vector<18x32xf32>,
    return
  }
}

</mosaic_0001>

<llo_original>
// kernel: attention_classifier_forward.4
$region0: #{attention_classifier_forward.4}
  #allocation0 [shape = 'u32[]', space=smem, size = 0x4, offset = 0x4, fixed_abs, tag = 'smem constant byte address 0x4 - core index']
  #allocation1 [shape = 'u32[72,128]{1,0:T(1,128)}', space=vmem, size = 0x9000, scoped, tag = 'internal scratch']
  #allocation2 [shape = 'f32[18,32]{1,0:T(8,128)}', space=vmem, size = 0x3000, scoped, tag = 'scratch operand']
  %s0 = inlined_call_operand.vmem [shape: f32[18,16], index: 0, kind: input, shape index: {}]
  %s1 = inlined_call_operand.vmem [shape: bf16[16,32], index: 1, kind: input, shape index: {}]
  %s2 = inlined_call_operand.vmem [shape: f32[1,32], index: 2, kind: input, shape index: {}]
  %s3 = inlined_call_operand.vmem [shape: f32[18,32], index: 3, kind: output, shape index: {}]
  %s4 = sld [smem:[#allocation0]]
  $region30: #{attention_classifier_forward.4} parent=0
    _
  %s6 = ssub.s32 1, %s4
  %s7 = scalar_select 0, %s6, %s4
  // Predicated region
  $region2: #{attention_classifier_forward.4} parent=0 // pred_check
    _
  $region3: #{attention_classifier_forward.4} parent=0 // pred_check_branch
    %9 = sbr.rel (0) target = $region5
  $region4: #{attention_classifier_forward.4} parent=0 // pred_region
    _
  $region5: #{attention_classifier_forward.4} parent=0 // pred_fallthru
    _
  // Predicated region
  $region6: #{attention_classifier_forward.4} parent=0 // pred_check
    _
  $region7: #{attention_classifier_forward.4} parent=0 // pred_check_branch
    %11 = sbr.rel (0) target = $region9
  $region8: #{attention_classifier_forward.4} parent=0 // pred_region
    _
  $region9: #{attention_classifier_forward.4} parent=0 // pred_fallthru
    _
  // Predicated region
  $region10: #{attention_classifier_forward.4} parent=0 // pred_check
    _
  $region11: #{attention_classifier_forward.4} parent=0 // pred_check_branch
    %13 = sbr.rel (0) target = $region13
  $region12: #{attention_classifier_forward.4} parent=0 // pred_region
    _
  $region13: #{attention_classifier_forward.4} parent=0 // pred_fallthru
    _
  %p15 = scmp.eq.s32.totalorder 0, 0
  // Predicated region
  $region14: #{attention_classifier_forward.4} parent=0 // pred_check
    %p16 = pneg %p15
  $region15: #{attention_classifier_forward.4} parent=0 // pred_check_branch
    %18 = sbr.rel (%p16) target = $region17
  $region16: #{attention_classifier_forward.4} parent=0 // pred_region
    %vm19 = vcmask 261120
    %20 = vst.msk [vmem:[#allocation2] sm:$0xff] %vm19, 0.0
    %21 = vst.msk [vmem:[#allocation2 + $0x8] sm:$0xff] %vm19, 0.0
    %vm22 = vcmask 254976
    %23 = vst.msk [vmem:[#allocation2 + $0x10] sm:$0x3] %vm22, 0.0
  $region17: #{attention_classifier_forward.4} parent=0 // pred_fallthru
    _
  %v24 = vld [vmem:[%s0] sm:$0xff]
  %v25 = vld [vmem:[%s0 + $0x8] sm:$0xff]
  %v26 = vld [vmem:[%s0 + $0x10] sm:$0x3]
  %v27 = vld [vmem:[#allocation2] sm:$0xff]
  %v28 = vld [vmem:[#allocation2 + $0x8] sm:$0xff]
  %v29 = vld [vmem:[#allocation2 + $0x10] sm:$0x3]
  %v30 = vpack.c.bf16 %v25, %v24
  %v31 = vpack.c.bf16 %v26, %v26
  %v32 = vld [vmem:[%s1] sm:$0xf]
  %v33 = vld [vmem:[%s1 + $0x4] sm:$0xf]
  %v36 = vunpack.c.l.b16 %v32
  %v37 = vunpack.c.l.b16 %v33
  %v38 = vpack.c.b16 %v37, %v36
  %vm40 = vcmask 130048
  %v42 = vsel %vm40, %v30, 0
  %v45 = vsel %vm40, %v31, 0
  %47 = vmatpush.bf16.msra.mxu0 0
  %48 = vmatpush.bf16.msra.mxu0 0
  %49 = vmatpush.bf16.msra.mxu0 0
  %50 = vmatpush.bf16.msra.mxu0 0
  %51 = vmatpush.bf16.msra.mxu0 0
  %52 = vmatpush.bf16.msra.mxu0 0
  %53 = vmatpush.bf16.msra.mxu0 0
  %54 = vmatpush.bf16.msra.mxu0 %v38
  %55 = vmatmul.bf16.gmra.mxu0 %v42
  %v56 = vpop.f32.mrf.mxu0
  %v57 = vadd.f32 0.0, %v56
  %v58 = vpop.f32.mrf.mxu0
  %v59 = vadd.f32 0.0, %v58
  %60 = vmatmul.bf16.gmra.mxu0 %v45
  %v61 = vpop.f32.mrf.mxu0
  %v62 = vadd.f32 0.0, %v61
  %v63 = vpop.f32.mrf.mxu0
  %64 = vdwg.mxu0
  %v65 = vadd.f32 %v27, %v57
  %v66 = vadd.f32 %v28, %v59
  %v67 = vadd.f32 %v29, %v62
  %vm68 = vcmask 261120
  %69 = vst.msk [vmem:[#allocation2] sm:$0xff] %vm68, %v65
  %70 = vst.msk [vmem:[#allocation2 + $0x8] sm:$0xff] %vm68, %v66
  %vm71 = vcmask 254976
  %72 = vst.msk [vmem:[#allocation2 + $0x10] sm:$0x3] %vm71, %v67
  // Predicated region
  $region18: #{attention_classifier_forward.4} parent=0 // pred_check
    %p73 = pneg %p15
  $region19: #{attention_classifier_forward.4} parent=0 // pred_check_branch
    %75 = sbr.rel (%p73) target = $region21
  $region20: #{attention_classifier_forward.4} parent=0 // pred_region
    %v76 = vld [vmem:[#allocation2] sm:$0xff]
    %v77 = vld [vmem:[#allocation2 + $0x8] sm:$0xff]
    %v78 = vld [vmem:[#allocation2 + $0x10] sm:$0x3]
    %v79 = vld [vmem:[%s2] sm:$0x1]
    %v81 = vperm.slane %v79, 0
    %v83 = vadd.f32 %v76, %v81
    %v84 = vadd.f32 %v77, %v81
    %v85 = vadd.f32 %v78, %v81
    %86 = vst.msk [vmem:[%s3] sm:$0xff] %vm68, %v83
    %87 = vst.msk [vmem:[%s3 + $0x8] sm:$0xff] %vm68, %v84
    %88 = vst.msk [vmem:[%s3 + $0x10] sm:$0x3] %vm71, %v85
  $region21: #{attention_classifier_forward.4} parent=0 // pred_fallthru
    _
  // Predicated region
  $region22: #{attention_classifier_forward.4} parent=0 // pred_check
    _
  $region23: #{attention_classifier_forward.4} parent=0 // pred_check_branch
    %90 = sbr.rel (0) target = $region25
  $region24: #{attention_classifier_forward.4} parent=0 // pred_region
    _
  $region25: #{attention_classifier_forward.4} parent=0 // pred_fallthru
    _
  // Predicated region
  $region26: #{attention_classifier_forward.4} parent=0 // pred_check
    _
  $region27: #{attention_classifier_forward.4} parent=0 // pred_check_branch
    %92 = sbr.rel (0) target = $region29
  $region28: #{attention_classifier_forward.4} parent=0 // pred_region
    _
  $region29: #{attention_classifier_forward.4} parent=0 // pred_fallthru
    _

// kernel: attention_classifier_forward.7
$region0: #{attention_classifier_forward.7}
  #allocation0 [shape = 'u32[]', space=smem, size = 0x4, offset = 0x4, fixed_abs, tag = 'smem constant byte address 0x4 - core index']
  #allocation1 [shape = 'u32[72,128]{1,0:T(1,128)}', space=vmem, size = 0x9000, scoped, tag = 'internal scratch']
  #allocation2 [shape = 'f32[2,5]{1,0:T(2,128)}', space=vmem, size = 0x400, scoped, tag = 'scratch operand']
  %s0 = inlined_call_operand.vmem [shape: f32[2,32], index: 0, kind: input, shape index: {}]
  %s1 = inlined_call_operand.vmem [shape: bf16[32,5], index: 1, kind: input, shape index: {}]
  %s2 = inlined_call_operand.vmem [shape: f32[1,5], index: 2, kind: input, shape index: {}]
  %s3 = inlined_call_operand.hbm [shape: f32[2,5], index: 3, kind: output, shape index: {}]
  %s4 = sld [smem:[#allocation0]]
  $region30: #{attention_classifier_forward.7} parent=0
    _
  %s6 = ssub.s32 1, %s4
  %s7 = scalar_select 0, %s6, %s4
  $region1: #{attention_classifier_forward.7} parent=0
    #allocation3 [shape = 'u8[1024]{0}', space=vmem, size = 0x400, scoped, tag = 'output window, operand 0, single buffered']
    #allocation4 [shape = 's32[1]{0}', space=sflag, size = 0x4, scoped, tag = 'scoped memory for attention_classifier_forward.7']
    %8 = vsyncpa [#allocation4], 0
    // Predicated region
    $region2: #{attention_classifier_forward.7} parent=1 // pred_check
      _
    $region3: #{attention_classifier_forward.7} parent=1 // pred_check_branch
      %10 = sbr.rel (0) target = $region5
    $region4: #{attention_classifier_forward.7} parent=1 // pred_region
      _
    $region5: #{attention_classifier_forward.7} parent=1 // pred_fallthru
      _
    // Predicated region
    $region6: #{attention_classifier_forward.7} parent=1 // pred_check
      _
    $region7: #{attention_classifier_forward.7} parent=1 // pred_check_branch
      %12 = sbr.rel (0) target = $region9
    $region8: #{attention_classifier_forward.7} parent=1 // pred_region
      _
    $region9: #{attention_classifier_forward.7} parent=1 // pred_fallthru
      _
    // Predicated region
    $region10: #{attention_classifier_forward.7} parent=1 // pred_check
      _
    $region11: #{attention_classifier_forward.7} parent=1 // pred_check_branch
      %14 = sbr.rel (0) target = $region13
    $region12: #{attention_classifier_forward.7} parent=1 // pred_region
      _
    $region13: #{attention_classifier_forward.7} parent=1 // pred_fallthru
      _
    %p16 = scmp.eq.s32.totalorder 0, 0
    // Predicated region
    $region14: #{attention_classifier_forward.7} parent=1 // pred_check
      %p17 = pneg %p16
    $region15: #{attention_classifier_forward.7} parent=1 // pred_check_branch
      %19 = sbr.rel (%p17) target = $region17
    $region16: #{attention_classifier_forward.7} parent=1 // pred_region
      %vm20 = vcmask 33792
      %21 = vst.msk [vmem:[#allocation2] sm:$0x3] %vm20, 0.0
    $region17: #{attention_classifier_forward.7} parent=1 // pred_fallthru
      _
    %v22 = vld [vmem:[%s0] sm:$0x3]
    %v23 = vmul.f32 %v22, 0.5
    %v24 = vmul.f32 %v22, 0.70710677
    %vm25 = vcmp.ge.f32.partialorder %v24, 0.0
    %v26 = vsel %vm25, 1.0, -1.0
    %v27 = vmul.f32 %v24, %v26
    %v28 = vmul.f32 %v27, 0.3275911
    %v29 = vadd.f32 %v28, 1.0
    %v30 = vrcp.pop %v29
    %v31 = vmul.f32 %v29, %v30
    %v32 = vsub.f32 1.0, %v31
    %v33 = vmul.f32 %v30, %v32
    %v34 = vadd.f32 %v30, %v33
    %vm35 = vweird.f32 %v29
    %vm36 = vweird.f32 %v30
    %vm37 = vmor %vm35, %vm36
    %v38 = vsel %vm37, %v30, %v34
    %v39 = vand.u32 2147483647, %v29
    %vm40 = vcmp.eq.f32.partialorder %v39, 8.507059e+37
    %v41 = vand.u32 %v29, 2147483648
    %v42 = vor.u32 1.1754944e-38, %v41
    %v43 = vsel %vm40, %v42, %v38
    %v44 = vmul.f32 1.0, %v43
    %v45 = vmul.f32 %v44, 1.0614054
    %v46 = vadd.f32 %v45, -1.4531521
    %v47 = vmul.f32 %v46, %v44
    %v48 = vadd.f32 %v47, 1.4214138
    %v49 = vmul.f32 %v48, %v44
    %v50 = vadd.f32 %v49, -0.28449672
    %v51 = vmul.f32 %v50, %v44
    %v52 = vadd.f32 %v51, 0.2548296
    %v53 = vmul.f32 %v52, %v44
    %v54 = vmul.f32 %v27, %v27
    %v55 = vsub.f32 0.0, %v54
    %v56 = vmul.f32 %v55, 1.442695
    %v57 = vpow.pop %v56
    %v58 = vmul.f32 %v53, %v57
    %v59 = vsub.f32 1.0, %v58
    %v60 = vmul.f32 %v26, %v59
    %v61 = vadd.f32 %v60, 1.0
    %v62 = vmul.f32 %v23, %v61
    %v63 = vld [vmem:[#allocation2] sm:$0x3]
    %v64 = vpack.c.bf16 %v62, %v62
    %v65 = vld [vmem:[%s1] sm:$0xf]
    %v66 = vld [vmem:[%s1 + $0x4] sm:$0xf]
    %v67 = vld [vmem:[%s1 + $0x8] sm:$0xf]
    %v68 = vld [vmem:[%s1 + $0xc] sm:$0xf]
    %v73 = vunpack.c.l.b16 %v65
    %v74 = vunpack.c.l.b16 %v66
    %v75 = vunpack.c.l.b16 %v67
    %v76 = vunpack.c.l.b16 %v68
    %v77 = vpack.c.b16 %v74, %v73
    %v78 = vpack.c.b16 %v76, %v75
    %vm81 = vcmask 261120
    %v83 = vsel %vm81, %v64, 0
    %85 = vmatpush.bf16.msra.mxu0 0
    %86 = vmatpush.bf16.msra.mxu0 0
    %87 = vmatpush.bf16.msra.mxu0 0
    %88 = vmatpush.bf16.msra.mxu0 0
    %89 = vmatpush.bf16.msra.mxu0 0
    %90 = vmatpush.bf16.msra.mxu0 0
    %91 = vmatpush.bf16.msra.mxu0 %v78
    %92 = vmatpush.bf16.msra.mxu0 %v77
    %93 = vmatmul.bf16.gmra.mxu0 %v83
    %v94 = vpop.f32.mrf.mxu0
    %v95 = vadd.f32 0.0, %v94
    %v96 = vpop.f32.mrf.mxu0
    %97 = vdwg.mxu0
    %v98 = vadd.f32 %v63, %v95
    %vm99 = vcmask 33792
    %100 = vst.msk [vmem:[#allocation2] sm:$0x3] %vm99, %v98
    // Predicated region
    $region18: #{attention_classifier_forward.7} parent=1 // pred_check
      %p101 = pneg %p16
    $region19: #{attention_classifier_forward.7} parent=1 // pred_check_branch
      %103 = sbr.rel (%p101) target = $region21
    $region20: #{attention_classifier_forward.7} parent=1 // pred_region
      %v104 = vld [vmem:[#allocation2] sm:$0x3]
      %v105 = vld [vmem:[%s2] sm:$0x1]
      %v107 = vperm.slane %v105, 0
      %v109 = vadd.f32 %v104, %v107
      %110 = vst.msk [vmem:[#allocation3] sm:$0x3] %vm99, %v109
    $region21: #{attention_classifier_forward.7} parent=1 // pred_fallthru
      _
    // Predicated region
    $region22: #{attention_classifier_forward.7} parent=1 // pred_check
      _
    $region23: #{attention_classifier_forward.7} parent=1 // pred_check_branch
      %112 = sbr.rel (0) target = $region25
    $region24: #{attention_classifier_forward.7} parent=1 // pred_region
      %114 = vsyncadd [#allocation4], 0
      %s116 = sshll.u32 [#allocation3], 4
      %s117 = int_to_ptr.vmem [resolvable:$true] %s116
      %s118 = sshll.u32 %s3, 4
      %s119 = int_to_ptr.hbm [resolvable:$true] %s118
      %121 = dma.vmem_to_hbm [thread:$0]  %s117, 32, %s119, [#allocation4]
    $region25: #{attention_classifier_forward.7} parent=1 // pred_fallthru
      _
    // Predicated region
    $region26: #{attention_classifier_forward.7} parent=1 // pred_check
      _
    $region27: #{attention_classifier_forward.7} parent=1 // pred_check_branch
      %123 = sbr.rel (0) target = $region29
    $region28: #{attention_classifier_forward.7} parent=1 // pred_region
      %125 = dma.done [#allocation4], 32
    $region29: #{attention_classifier_forward.7} parent=1 // pred_fallthru
      _
    %126 = vsyncpa [#allocation4], 1

// kernel: attention_classifier_forward.5
$region0: #{attention_classifier_forward.5}
  #allocation0 [shape = 'u32[]', space=smem, size = 0x4, offset = 0x4, fixed_abs, tag = 'smem constant byte address 0x4 - core index']
  #allocation1 [shape = 'u32[72,128]{1,0:T(1,128)}', space=vmem, size = 0x9000, scoped, tag = 'internal scratch']
  %s0 = inlined_call_operand.vmem [shape: f32[18,32], index: 0, kind: input, shape index: {}]
  %s1 = inlined_call_operand.vmem [shape: bf16[32,96], index: 1, kind: input, shape index: {}]
  %s2 = inlined_call_operand.vmem [shape: f32[1,96], index: 2, kind: input, shape index: {}]
  %s3 = inlined_call_operand.vmem [shape: bf16[32,32], index: 3, kind: input, shape index: {}]
  %s4 = inlined_call_operand.vmem [shape: f32[1,32], index: 4, kind: input, shape index: {}]
  %s5 = inlined_call_operand.vmem [shape: f32[1,32], index: 5, kind: input, shape index: {}]
  %s6 = inlined_call_operand.vmem [shape: f32[1,32], index: 6, kind: input, shape index: {}]
  %s7 = inlined_call_operand.vmem [shape: bf16[32,64], index: 7, kind: input, shape index: {}]
  %s8 = inlined_call_operand.vmem [shape: f32[1,64], index: 8, kind: input, shape index: {}]
  %s9 = inlined_call_operand.vmem [shape: bf16[64,32], index: 9, kind: input, shape index: {}]
  %s10 = inlined_call_operand.vmem [shape: f32[1,32], index: 10, kind: input, shape index: {}]
  %s11 = inlined_call_operand.vmem [shape: f32[1,32], index: 11, kind: input, shape index: {}]
  %s12 = inlined_call_operand.vmem [shape: f32[1,32], index: 12, kind: input, shape index: {}]
  %s13 = inlined_call_operand.vmem [shape: f32[18,32], index: 13, kind: output, shape index: {}]
  %s14 = sld [smem:[#allocation0]]
  $region62: #{attention_classifier_forward.5} parent=0
    _
  %s16 = ssub.s32 1, %s14
  %s17 = scalar_select 0, %s16, %s14
  // Predicated region
  $region2: #{attention_classifier_forward.5} parent=0 // pred_check
    _
  $region3: #{attention_classifier_forward.5} parent=0 // pred_check_branch
    %19 = sbr.rel (0) target = $region5
  $region4: #{attention_classifier_forward.5} parent=0 // pred_region
    _
  $region5: #{attention_classifier_forward.5} parent=0 // pred_fallthru
    _
  // Predicated region
  $region6: #{attention_classifier_forward.5} parent=0 // pred_check
    _
  $region7: #{attention_classifier_forward.5} parent=0 // pred_check_branch
    %21 = sbr.rel (0) target = $region9
  $region8: #{attention_classifier_forward.5} parent=0 // pred_region
    _
  $region9: #{attention_classifier_forward.5} parent=0 // pred_fallthru
    _
  // Predicated region
  $region10: #{attention_classifier_forward.5} parent=0 // pred_check
    _
  $region11: #{attention_classifier_forward.5} parent=0 // pred_check_branch
    %23 = sbr.rel (0) target = $region13
  $region12: #{attention_classifier_forward.5} parent=0 // pred_region
    _
  $region13: #{attention_classifier_forward.5} parent=0 // pred_fallthru
    _
  // Predicated region
  $region14: #{attention_classifier_forward.5} parent=0 // pred_check
    _
  $region15: #{attention_classifier_forward.5} parent=0 // pred_check_branch
    %25 = sbr.rel (0) target = $region17
  $region16: #{attention_classifier_forward.5} parent=0 // pred_region
    _
  $region17: #{attention_classifier_forward.5} parent=0 // pred_fallthru
    _
  // Predicated region
  $region18: #{attention_classifier_forward.5} parent=0 // pred_check
    _
  $region19: #{attention_classifier_forward.5} parent=0 // pred_check_branch
    %27 = sbr.rel (0) target = $region21
  $region20: #{attention_classifier_forward.5} parent=0 // pred_region
    _
  $region21: #{attention_classifier_forward.5} parent=0 // pred_fallthru
    _
  // Predicated region
  $region22: #{attention_classifier_forward.5} parent=0 // pred_check
    _
  $region23: #{attention_classifier_forward.5} parent=0 // pred_check_branch
    %29 = sbr.rel (0) target = $region25
  $region24: #{attention_classifier_forward.5} parent=0 // pred_region
    _
  $region25: #{attention_classifier_forward.5} parent=0 // pred_fallthru
    _
  // Predicated region
  $region26: #{attention_classifier_forward.5} parent=0 // pred_check
    _
  $region27: #{attention_classifier_forward.5} parent=0 // pred_check_branch
    %31 = sbr.rel (0) target = $region29
  $region28: #{attention_classifier_forward.5} parent=0 // pred_region
    _
  $region29: #{attention_classifier_forward.5} parent=0 // pred_fallthru
    _
  // Predicated region
  $region30: #{attention_classifier_forward.5} parent=0 // pred_check
    _
  $region31: #{attention_classifier_forward.5} parent=0 // pred_check_branch
    %33 = sbr.rel (0) target = $region33
  $region32: #{attention_classifier_forward.5} parent=0 // pred_region
    _
  $region33: #{attention_classifier_forward.5} parent=0 // pred_fallthru
    _
  // Predicated region
  $region34: #{attention_classifier_forward.5} parent=0 // pred_check
    _
  $region35: #{attention_classifier_forward.5} parent=0 // pred_check_branch
    %35 = sbr.rel (0) target = $region37
  $region36: #{attention_classifier_forward.5} parent=0 // pred_region
    _
  $region37: #{attention_classifier_forward.5} parent=0 // pred_fallthru
    _
  // Predicated region
  $region38: #{attention_classifier_forward.5} parent=0 // pred_check
    _
  $region39: #{attention_classifier_forward.5} parent=0 // pred_check_branch
    %37 = sbr.rel (0) target = $region41
  $region40: #{attention_classifier_forward.5} parent=0 // pred_region
    _
  $region41: #{attention_classifier_forward.5} parent=0 // pred_fallthru
    _
  // Predicated region
  $region42: #{attention_classifier_forward.5} parent=0 // pred_check
    _
  $region43: #{attention_classifier_forward.5} parent=0 // pred_check_branch
    %39 = sbr.rel (0) target = $region45
  $region44: #{attention_classifier_forward.5} parent=0 // pred_region
    _
  $region45: #{attention_classifier_forward.5} parent=0 // pred_fallthru
    _
  // Predicated region
  $region46: #{attention_classifier_forward.5} parent=0 // pred_check
    _
  $region47: #{attention_classifier_forward.5} parent=0 // pred_check_branch
    %41 = sbr.rel (0) target = $region49
  $region48: #{attention_classifier_forward.5} parent=0 // pred_region
    _
  $region49: #{attention_classifier_forward.5} parent=0 // pred_fallthru
    _
  // Predicated region
  $region50: #{attention_classifier_forward.5} parent=0 // pred_check
    _
  $region51: #{attention_classifier_forward.5} parent=0 // pred_check_branch
    %43 = sbr.rel (0) target = $region53
  $region52: #{attention_classifier_forward.5} parent=0 // pred_region
    _
  $region53: #{attention_classifier_forward.5} parent=0 // pred_fallthru
    _
  %v45 = vld [vmem:[%s0] sm:$0xff]
  %v46 = vld [vmem:[%s0 + $0x8] sm:$0xff]
  %v47 = vld [vmem:[%s0 + $0x10] sm:$0x3]
  %v48 = vpack.c.bf16 %v46, %v45
  %v49 = vpack.c.bf16 %v47, %v47
  %v50 = vld [vmem:[%s1] sm:$0xf]
  %v51 = vld [vmem:[%s1 + $0x4] sm:$0xf]
  %v52 = vld [vmem:[%s1 + $0x8] sm:$0xf]
  %v53 = vld [vmem:[%s1 + $0xc] sm:$0xf]
  %v54 = vld [vmem:[%s2] sm:$0x1]
  %v56 = vperm.slane %v54, 0
  %v62 = vunpack.c.l.b16 %v50
  %v63 = vunpack.c.l.b16 %v51
  %v64 = vunpack.c.l.b16 %v52
  %v65 = vunpack.c.l.b16 %v53
  %v66 = vpack.c.b16 %v63, %v62
  %v67 = vpack.c.b16 %v65, %v64
  %vm70 = vcmask 261120
  %v72 = vsel %vm70, %v48, 0
  %v75 = vsel %vm70, %v49, 0
  %77 = vmatpush.bf16.msra.mxu0 0
  %78 = vmatpush.bf16.msra.mxu0 0
  %79 = vmatpush.bf16.msra.mxu0 0
  %80 = vmatpush.bf16.msra.mxu0 0
  %81 = vmatpush.bf16.msra.mxu0 0
  %82 = vmatpush.bf16.msra.mxu0 0
  %83 = vmatpush.bf16.msra.mxu0 %v67
  %84 = vmatpush.bf16.msra.mxu0 %v66
  %85 = vmatmul.bf16.gmra.mxu0 %v72
  %v86 = vpop.f32.mrf.mxu0
  %v87 = vadd.f32 %v56, %v86
  %v88 = vpop.f32.mrf.mxu0
  %v89 = vadd.f32 %v56, %v88
  %90 = vmatmul.bf16.gmra.mxu0 %v75
  %v91 = vpop.f32.mrf.mxu0
  %v92 = vadd.f32 %v56, %v91
  %v93 = vpop.f32.mrf.mxu0
  %94 = vdwg.mxu0
  %v95 = vpack.c.bf16 %v89, %v87
  %97 = vrot.lane.b32.xlu0 %v95, 96
  %v98 = vpop.permute.xlu0 %97
  %vm99 = vcmask 64512
  %v101 = vsel %vm99, %v95, 0
  %v104 = vsel %vm99, %v98, 0
  %106 = vmatpush.bf16.xpose.msra.mxu0 0
  %107 = vmatpush.bf16.xpose.msra.mxu0 0
  %108 = vmatpush.bf16.xpose.msra.mxu0 0
  %109 = vmatpush.bf16.xpose.msra.mxu0 0
  %110 = vmatpush.bf16.xpose.msra.mxu0 0
  %111 = vmatpush.bf16.xpose.msra.mxu0 0
  %112 = vmatpush.bf16.xpose.msra.mxu0 0
  %113 = vmatpush.bf16.xpose.msra.mxu0 %v104
  %114 = vmatmul.bf16.gmra.mxu0 %v101
  %v115 = vpop.f32.mrf.mxu0
  %v116 = vadd.f32 0.0, %v115
  %v117 = vpop.f32.mrf.mxu0
  %v118 = vadd.f32 0.0, %v117
  %119 = vdwg.mxu0
  %vm120 = vcmask 72704
  %v121 = vsel %vm120, %v116, -inf
  %122 = vmax.xlane.f32.xlu0 %v121
  %v123 = vpop.xlane.xlu0 %122
  %vm124 = vcmask 65536
  %v125 = vsel %vm124, %v118, -inf
  %126 = vmax.xlane.f32.xlu0 %v125
  %v127 = vpop.xlane.xlu0 %126
  %v128 = vsub.f32 %v116, %v123
  %v129 = vsub.f32 %v118, %v127
  %v130 = vmul.f32 %v128, 1.442695
  %v131 = vpow.pop %v130
  %v132 = vmul.f32 %v129, 1.442695
  %v133 = vpow.pop %v132
  %v134 = vsel %vm120, %v131, 0.0
  %135 = vadd.xlane.f32.xlu0 %v134
  %v136 = vpop.xlane.xlu0 %135
  %v137 = vsel %vm124, %v133, 0.0
  %138 = vadd.xlane.f32.xlu0 %v137
  %v139 = vpop.xlane.xlu0 %138
  %v140 = vrcp.pop %v136
  %v141 = vrcp.pop %v139
  %v142 = vmul.f32 %v131, %v140
  %v143 = vmul.f32 %v133, %v141
  %v144 = vpack.c.bf16 %v143, %v142
  %145 = vrot.lane.b32.xlu0 %v95, 64
  %v146 = vpop.permute.xlu0 %145
  %v148 = vsel %vm120, %v144, 0
  %vm150 = vcmask 1043456
  %vm151 = vcmask 1044480
  %v152 = vsel %vm150, 4294967295, 65535
  %v153 = vsel %vm151, %v152, 0
  %v155 = vand.u32 %v146, %v153
  %157 = vmatpush.bf16.msra.mxu0 0
  %158 = vmatpush.bf16.msra.mxu0 0
  %159 = vmatpush.bf16.msra.mxu0 0
  %160 = vmatpush.bf16.msra.mxu0 0
  %161 = vmatpush.bf16.msra.mxu0 0
  %162 = vmatpush.bf16.msra.mxu0 0
  %163 = vmatpush.bf16.msra.mxu0 0
  %164 = vmatpush.bf16.msra.mxu0 %v155
  %165 = vmatmul.bf16.gmra.mxu0 %v148
  %v166 = vpop.f32.mrf.mxu0
  %v167 = vadd.f32 0.0, %v166
  %v168 = vpop.f32.mrf.mxu0
  %v169 = vadd.f32 0.0, %v168
  %170 = vdwg.mxu0
  %171 = vrot.lane.b32.xlu0 %v95, 120
  %v172 = vpop.permute.xlu0 %171
  %173 = vrot.lane.b32.xlu0 %v95, 88
  %v174 = vpop.permute.xlu0 %173
  %v176 = vsel %vm99, %v172, 0
  %v179 = vsel %vm99, %v174, 0
  %181 = vmatpush.bf16.xpose.msra.mxu0 0
  %182 = vmatpush.bf16.xpose.msra.mxu0 0
  %183 = vmatpush.bf16.xpose.msra.mxu0 0
  %184 = vmatpush.bf16.xpose.msra.mxu0 0
  %185 = vmatpush.bf16.xpose.msra.mxu0 0
  %186 = vmatpush.bf16.xpose.msra.mxu0 0
  %187 = vmatpush.bf16.xpose.msra.mxu0 0
  %188 = vmatpush.bf16.xpose.msra.mxu0 %v179
  %189 = vmatmul.bf16.gmra.mxu0 %v176
  %v190 = vpop.f32.mrf.mxu0
  %v191 = vadd.f32 0.0, %v190
  %v192 = vpop.f32.mrf.mxu0
  %v193 = vadd.f32 0.0, %v192
  %194 = vdwg.mxu0
  %v195 = vsel %vm120, %v191, -inf
  %196 = vmax.xlane.f32.xlu0 %v195
  %v197 = vpop.xlane.xlu0 %196
  %v198 = vsel %vm124, %v193, -inf
  %199 = vmax.xlane.f32.xlu0 %v198
  %v200 = vpop.xlane.xlu0 %199
  %v201 = vsub.f32 %v191, %v197
  %v202 = vsub.f32 %v193, %v200
  %v203 = vmul.f32 %v201, 1.442695
  %v204 = vpow.pop %v203
  %v205 = vmul.f32 %v202, 1.442695
  %v206 = vpow.pop %v205
  %v207 = vsel %vm120, %v204, 0.0
  %208 = vadd.xlane.f32.xlu0 %v207
  %v209 = vpop.xlane.xlu0 %208
  %v210 = vsel %vm124, %v206, 0.0
  %211 = vadd.xlane.f32.xlu0 %v210
  %v212 = vpop.xlane.xlu0 %211
  %v213 = vrcp.pop %v209
  %v214 = vrcp.pop %v212
  %v215 = vmul.f32 %v204, %v213
  %v216 = vmul.f32 %v206, %v214
  %v217 = vpack.c.bf16 %v216, %v215
  %218 = vrot.lane.b32.xlu0 %v95, 56
  %v219 = vpop.permute.xlu0 %218
  %v221 = vsel %vm120, %v217, 0
  %v224 = vand.u32 %v219, %v153
  %226 = vmatpush.bf16.msra.mxu0 0
  %227 = vmatpush.bf16.msra.mxu0 0
  %228 = vmatpush.bf16.msra.mxu0 0
  %229 = vmatpush.bf16.msra.mxu0 0
  %230 = vmatpush.bf16.msra.mxu0 0
  %231 = vmatpush.bf16.msra.mxu0 0
  %232 = vmatpush.bf16.msra.mxu0 0
  %233 = vmatpush.bf16.msra.mxu0 %v224
  %234 = vmatmul.bf16.gmra.mxu0 %v221
  %v235 = vpop.f32.mrf.mxu0
  %v236 = vadd.f32 0.0, %v235
  %v237 = vpop.f32.mrf.mxu0
  %v238 = vadd.f32 0.0, %v237
  %239 = vdwg.mxu0
  %240 = vrot.lane.b32.xlu0 %v95, 112
  %v241 = vpop.permute.xlu0 %240
  %242 = vrot.lane.b32.xlu0 %v95, 80
  %v243 = vpop.permute.xlu0 %242
  %v245 = vsel %vm99, %v241, 0
  %v248 = vsel %vm99, %v243, 0
  %250 = vmatpush.bf16.xpose.msra.mxu0 0
  %251 = vmatpush.bf16.xpose.msra.mxu0 0
  %252 = vmatpush.bf16.xpose.msra.mxu0 0
  %253 = vmatpush.bf16.xpose.msra.mxu0 0
  %254 = vmatpush.bf16.xpose.msra.mxu0 0
  %255 = vmatpush.bf16.xpose.msra.mxu0 0
  %256 = vmatpush.bf16.xpose.msra.mxu0 0
  %257 = vmatpush.bf16.xpose.msra.mxu0 %v248
  %258 = vmatmul.bf16.gmra.mxu0 %v245
  %v259 = vpop.f32.mrf.mxu0
  %v260 = vadd.f32 0.0, %v259
  %v261 = vpop.f32.mrf.mxu0
  %v262 = vadd.f32 0.0, %v261
  %263 = vdwg.mxu0
  %v264 = vsel %vm120, %v260, -inf
  %265 = vmax.xlane.f32.xlu0 %v264
  %v266 = vpop.xlane.xlu0 %265
  %v267 = vsel %vm124, %v262, -inf
  %268 = vmax.xlane.f32.xlu0 %v267
  %v269 = vpop.xlane.xlu0 %268
  %v270 = vsub.f32 %v260, %v266
  %v271 = vsub.f32 %v262, %v269
  %v272 = vmul.f32 %v270, 1.442695
  %v273 = vpow.pop %v272
  %v274 = vmul.f32 %v271, 1.442695
  %v275 = vpow.pop %v274
  %v276 = vsel %vm120, %v273, 0.0
  %277 = vadd.xlane.f32.xlu0 %v276
  %v278 = vpop.xlane.xlu0 %277
  %v279 = vsel %vm124, %v275, 0.0
  %280 = vadd.xlane.f32.xlu0 %v279
  %v281 = vpop.xlane.xlu0 %280
  %v282 = vrcp.pop %v278
  %v283 = vrcp.pop %v281
  %v284 = vmul.f32 %v273, %v282
  %v285 = vmul.f32 %v275, %v283
  %v286 = vpack.c.bf16 %v285, %v284
  %287 = vrot.lane.b32.xlu0 %v95, 48
  %v288 = vpop.permute.xlu0 %287
  %v290 = vsel %vm120, %v286, 0
  %v293 = vand.u32 %v288, %v153
  %295 = vmatpush.bf16.msra.mxu0 0
  %296 = vmatpush.bf16.msra.mxu0 0
  %297 = vmatpush.bf16.msra.mxu0 0
  %298 = vmatpush.bf16.msra.mxu0 0
  %299 = vmatpush.bf16.msra.mxu0 0
  %300 = vmatpush.bf16.msra.mxu0 0
  %301 = vmatpush.bf16.msra.mxu0 0
  %302 = vmatpush.bf16.msra.mxu0 %v293
  %303 = vmatmul.bf16.gmra.mxu0 %v290
  %v304 = vpop.f32.mrf.mxu0
  %v305 = vadd.f32 0.0, %v304
  %v306 = vpop.f32.mrf.mxu0
  %v307 = vadd.f32 0.0, %v306
  %308 = vdwg.mxu0
  %309 = vrot.lane.b32.xlu0 %v95, 104
  %v310 = vpop.permute.xlu0 %309
  %311 = vrot.lane.b32.xlu0 %v95, 72
  %v312 = vpop.permute.xlu0 %311
  %v314 = vsel %vm99, %v310, 0
  %v317 = vsel %vm99, %v312, 0
  %319 = vmatpush.bf16.xpose.msra.mxu0 0
  %320 = vmatpush.bf16.xpose.msra.mxu0 0
  %321 = vmatpush.bf16.xpose.msra.mxu0 0
  %322 = vmatpush.bf16.xpose.msra.mxu0 0
  %323 = vmatpush.bf16.xpose.msra.mxu0 0
  %324 = vmatpush.bf16.xpose.msra.mxu0 0
  %325 = vmatpush.bf16.xpose.msra.mxu0 0
  %326 = vmatpush.bf16.xpose.msra.mxu0 %v317
  %327 = vmatmul.bf16.gmra.mxu0 %v314
  %v328 = vpop.f32.mrf.mxu0
  %v329 = vadd.f32 0.0, %v328
  %v330 = vpop.f32.mrf.mxu0
  %v331 = vadd.f32 0.0, %v330
  %332 = vdwg.mxu0
  %v333 = vsel %vm120, %v329, -inf
  %334 = vmax.xlane.f32.xlu0 %v333
  %v335 = vpop.xlane.xlu0 %334
  %v336 = vsel %vm124, %v331, -inf
  %337 = vmax.xlane.f32.xlu0 %v336
  %v338 = vpop.xlane.xlu0 %337
  %v339 = vsub.f32 %v329, %v335
  %v340 = vsub.f32 %v331, %v338
  %v341 = vmul.f32 %v339, 1.442695
  %v342 = vpow.pop %v341
  %v343 = vmul.f32 %v340, 1.442695
  %v344 = vpow.pop %v343
  %v345 = vsel %vm120, %v342, 0.0
  %346 = vadd.xlane.f32.xlu0 %v345
  %v347 = vpop.xlane.xlu0 %346
  %v348 = vsel %vm124, %v344, 0.0
  %349 = vadd.xlane.f32.xlu0 %v348
  %v350 = vpop.xlane.xlu0 %349
  %v351 = vrcp.pop %v347
  %v352 = vrcp.pop %v350
  %v353 = vmul.f32 %v342, %v351
  %v354 = vmul.f32 %v344, %v352
  %v355 = vpack.c.bf16 %v354, %v353
  %356 = vrot.lane.b32.xlu0 %v95, 40
  %v357 = vpop.permute.xlu0 %356
  %v359 = vsel %vm120, %v355, 0
  %v362 = vand.u32 %v357, %v153
  %364 = vmatpush.bf16.msra.mxu0 0
  %365 = vmatpush.bf16.msra.mxu0 0
  %366 = vmatpush.bf16.msra.mxu0 0
  %367 = vmatpush.bf16.msra.mxu0 0
  %368 = vmatpush.bf16.msra.mxu0 0
  %369 = vmatpush.bf16.msra.mxu0 0
  %370 = vmatpush.bf16.msra.mxu0 0
  %371 = vmatpush.bf16.msra.mxu0 %v362
  %372 = vmatmul.bf16.gmra.mxu0 %v359
  %v373 = vpop.f32.mrf.mxu0
  %v374 = vadd.f32 0.0, %v373
  %v375 = vpop.f32.mrf.mxu0
  %v376 = vadd.f32 0.0, %v375
  %377 = vdwg.mxu0
  %380 = vrot.lane.b32.xlu0 %v236, 8
  %v381 = vpop.permute.xlu0 %380
  %382 = vrot.lane.b32.xlu0 %v238, 8
  %v383 = vpop.permute.xlu0 %382
  %388 = vrot.lane.b32.xlu0 %v305, 16
  %v389 = vpop.permute.xlu0 %388
  %390 = vrot.lane.b32.xlu0 %v307, 16
  %v391 = vpop.permute.xlu0 %390
  %396 = vrot.lane.b32.xlu0 %v374, 24
  %v397 = vpop.permute.xlu0 %396
  %398 = vrot.lane.b32.xlu0 %v376, 24
  %v399 = vpop.permute.xlu0 %398
  %v402 = vsel %vm99, %v167, %v381
  %v403 = vsel %vm99, %v169, %v383
  %vm404 = vcmask 130048
  %v405 = vsel %vm404, %v402, %v389
  %v406 = vsel %vm404, %v403, %v391
  %vm407 = vcmask 195584
  %v408 = vsel %vm407, %v405, %v397
  %v409 = vsel %vm407, %v406, %v399
  %v410 = vpack.c.bf16 %v92, %v89
  %v412 = vshrl.u32 %v410, 16
  %v414 = vshll.u32 %v410, 16
  %v416 = vrot.slane %v414, 1
  %v417 = vor.u32 %v412, %v416
  %418 = vrot.lane.b32.xlu0 %v417, 96
  %v419 = vpop.permute.xlu0 %418
  %v421 = vsel %vm99, %v417, 0
  %v424 = vsel %vm99, %v419, 0
  %426 = vmatpush.bf16.xpose.msra.mxu0 0
  %427 = vmatpush.bf16.xpose.msra.mxu0 0
  %428 = vmatpush.bf16.xpose.msra.mxu0 0
  %429 = vmatpush.bf16.xpose.msra.mxu0 0
  %430 = vmatpush.bf16.xpose.msra.mxu0 0
  %431 = vmatpush.bf16.xpose.msra.mxu0 0
  %432 = vmatpush.bf16.xpose.msra.mxu0 0
  %433 = vmatpush.bf16.xpose.msra.mxu0 %v424
  %434 = vmatmul.bf16.gmra.mxu0 %v421
  %v435 = vpop.f32.mrf.mxu0
  %v436 = vadd.f32 0.0, %v435
  %v437 = vpop.f32.mrf.mxu0
  %v438 = vadd.f32 0.0, %v437
  %439 = vdwg.mxu0
  %v440 = vsel %vm120, %v436, -inf
  %441 = vmax.xlane.f32.xlu0 %v440
  %v442 = vpop.xlane.xlu0 %441
  %v443 = vsel %vm124, %v438, -inf
  %444 = vmax.xlane.f32.xlu0 %v443
  %v445 = vpop.xlane.xlu0 %444
  %v446 = vsub.f32 %v436, %v442
  %v447 = vsub.f32 %v438, %v445
  %v448 = vmul.f32 %v446, 1.442695
  %v449 = vpow.pop %v448
  %v450 = vmul.f32 %v447, 1.442695
  %v451 = vpow.pop %v450
  %v452 = vsel %vm120, %v449, 0.0
  %453 = vadd.xlane.f32.xlu0 %v452
  %v454 = vpop.xlane.xlu0 %453
  %v455 = vsel %vm124, %v451, 0.0
  %456 = vadd.xlane.f32.xlu0 %v455
  %v457 = vpop.xlane.xlu0 %456
  %v458 = vrcp.pop %v454
  %v459 = vrcp.pop %v457
  %v460 = vmul.f32 %v449, %v458
  %v461 = vmul.f32 %v451, %v459
  %v462 = vpack.c.bf16 %v461, %v460
  %463 = vrot.lane.b32.xlu0 %v417, 64
  %v464 = vpop.permute.xlu0 %463
  %v466 = vsel %vm120, %v462, 0
  %v469 = vand.u32 %v464, %v153
  %471 = vmatpush.bf16.msra.mxu0 0
  %472 = vmatpush.bf16.msra.mxu0 0
  %473 = vmatpush.bf16.msra.mxu0 0
  %474 = vmatpush.bf16.msra.mxu0 0
  %475 = vmatpush.bf16.msra.mxu0 0
  %476 = vmatpush.bf16.msra.mxu0 0
  %477 = vmatpush.bf16.msra.mxu0 0
  %478 = vmatpush.bf16.msra.mxu0 %v469
  %479 = vmatmul.bf16.gmra.mxu0 %v466
  %v480 = vpop.f32.mrf.mxu0
  %v481 = vadd.f32 0.0, %v480
  %v482 = vpop.f32.mrf.mxu0
  %v483 = vadd.f32 0.0, %v482
  %484 = vdwg.mxu0
  %485 = vrot.lane.b32.xlu0 %v417, 120
  %v486 = vpop.permute.xlu0 %485
  %487 = vrot.lane.b32.xlu0 %v417, 88
  %v488 = vpop.permute.xlu0 %487
  %v490 = vsel %vm99, %v486, 0
  %v493 = vsel %vm99, %v488, 0
  %495 = vmatpush.bf16.xpose.msra.mxu0 0
  %496 = vmatpush.bf16.xpose.msra.mxu0 0
  %497 = vmatpush.bf16.xpose.msra.mxu0 0
  %498 = vmatpush.bf16.xpose.msra.mxu0 0
  %499 = vmatpush.bf16.xpose.msra.mxu0 0
  %500 = vmatpush.bf16.xpose.msra.mxu0 0
  %501 = vmatpush.bf16.xpose.msra.mxu0 0
  %502 = vmatpush.bf16.xpose.msra.mxu0 %v493
  %503 = vmatmul.bf16.gmra.mxu0 %v490
  %v504 = vpop.f32.mrf.mxu0
  %v505 = vadd.f32 0.0, %v504
  %v506 = vpop.f32.mrf.mxu0
  %v507 = vadd.f32 0.0, %v506
  %508 = vdwg.mxu0
  %v509 = vsel %vm120, %v505, -inf
  %510 = vmax.xlane.f32.xlu0 %v509
  %v511 = vpop.xlane.xlu0 %510
  %v512 = vsel %vm124, %v507, -inf
  %513 = vmax.xlane.f32.xlu0 %v512
  %v514 = vpop.xlane.xlu0 %513
  %v515 = vsub.f32 %v505, %v511
  %v516 = vsub.f32 %v507, %v514
  %v517 = vmul.f32 %v515, 1.442695
  %v518 = vpow.pop %v517
  %v519 = vmul.f32 %v516, 1.442695
  %v520 = vpow.pop %v519
  %v521 = vsel %vm120, %v518, 0.0
  %522 = vadd.xlane.f32.xlu0 %v521
  %v523 = vpop.xlane.xlu0 %522
  %v524 = vsel %vm124, %v520, 0.0
  %525 = vadd.xlane.f32.xlu0 %v524
  %v526 = vpop.xlane.xlu0 %525
  %v527 = vrcp.pop %v523
  %v528 = vrcp.pop %v526
  %v529 = vmul.f32 %v518, %v527
  %v530 = vmul.f32 %v520, %v528
  %v531 = vpack.c.bf16 %v530, %v529
  %532 = vrot.lane.b32.xlu0 %v417, 56
  %v533 = vpop.permute.xlu0 %532
  %v535 = vsel %vm120, %v531, 0
  %v538 = vand.u32 %v533, %v153
  %540 = vmatpush.bf16.msra.mxu0 0
  %541 = vmatpush.bf16.msra.mxu0 0
  %542 = vmatpush.bf16.msra.mxu0 0
  %543 = vmatpush.bf16.msra.mxu0 0
  %544 = vmatpush.bf16.msra.mxu0 0
  %545 = vmatpush.bf16.msra.mxu0 0
  %546 = vmatpush.bf16.msra.mxu0 0
  %547 = vmatpush.bf16.msra.mxu0 %v538
  %548 = vmatmul.bf16.gmra.mxu0 %v535
  %v549 = vpop.f32.mrf.mxu0
  %v550 = vadd.f32 0.0, %v549
  %v551 = vpop.f32.mrf.mxu0
  %v552 = vadd.f32 0.0, %v551
  %553 = vdwg.mxu0
  %554 = vrot.lane.b32.xlu0 %v417, 112
  %v555 = vpop.permute.xlu0 %554
  %556 = vrot.lane.b32.xlu0 %v417, 80
  %v557 = vpop.permute.xlu0 %556
  %v559 = vsel %vm99, %v555, 0
  %v562 = vsel %vm99, %v557, 0
  %564 = vmatpush.bf16.xpose.msra.mxu0 0
  %565 = vmatpush.bf16.xpose.msra.mxu0 0
  %566 = vmatpush.bf16.xpose.msra.mxu0 0
  %567 = vmatpush.bf16.xpose.msra.mxu0 0
  %568 = vmatpush.bf16.xpose.msra.mxu0 0
  %569 = vmatpush.bf16.xpose.msra.mxu0 0
  %570 = vmatpush.bf16.xpose.msra.mxu0 0
  %571 = vmatpush.bf16.xpose.msra.mxu0 %v562
  %572 = vmatmul.bf16.gmra.mxu0 %v559
  %v573 = vpop.f32.mrf.mxu0
  %v574 = vadd.f32 0.0, %v573
  %v575 = vpop.f32.mrf.mxu0
  %v576 = vadd.f32 0.0, %v575
  %577 = vdwg.mxu0
  %v578 = vsel %vm120, %v574, -inf
  %579 = vmax.xlane.f32.xlu0 %v578
  %v580 = vpop.xlane.xlu0 %579
  %v581 = vsel %vm124, %v576, -inf
  %582 = vmax.xlane.f32.xlu0 %v581
  %v583 = vpop.xlane.xlu0 %582
  %v584 = vsub.f32 %v574, %v580
  %v585 = vsub.f32 %v576, %v583
  %v586 = vmul.f32 %v584, 1.442695
  %v587 = vpow.pop %v586
  %v588 = vmul.f32 %v585, 1.442695
  %v589 = vpow.pop %v588
  %v590 = vsel %vm120, %v587, 0.0
  %591 = vadd.xlane.f32.xlu0 %v590
  %v592 = vpop.xlane.xlu0 %591
  %v593 = vsel %vm124, %v589, 0.0
  %594 = vadd.xlane.f32.xlu0 %v593
  %v595 = vpop.xlane.xlu0 %594
  %v596 = vrcp.pop %v592
  %v597 = vrcp.pop %v595
  %v598 = vmul.f32 %v587, %v596
  %v599 = vmul.f32 %v589, %v597
  %v600 = vpack.c.bf16 %v599, %v598
  %601 = vrot.lane.b32.xlu0 %v417, 48
  %v602 = vpop.permute.xlu0 %601
  %v604 = vsel %vm120, %v600, 0
  %v607 = vand.u32 %v602, %v153
  %609 = vmatpush.bf16.msra.mxu0 0
  %610 = vmatpush.bf16.msra.mxu0 0
  %611 = vmatpush.bf16.msra.mxu0 0
  %612 = vmatpush.bf16.msra.mxu0 0
  %613 = vmatpush.bf16.msra.mxu0 0
  %614 = vmatpush.bf16.msra.mxu0 0
  %615 = vmatpush.bf16.msra.mxu0 0
  %616 = vmatpush.bf16.msra.mxu0 %v607
  %617 = vmatmul.bf16.gmra.mxu0 %v604
  %v618 = vpop.f32.mrf.mxu0
  %v619 = vadd.f32 0.0, %v618
  %v620 = vpop.f32.mrf.mxu0
  %v621 = vadd.f32 0.0, %v620
  %622 = vdwg.mxu0
  %623 = vrot.lane.b32.xlu0 %v417, 104
  %v624 = vpop.permute.xlu0 %623
  %625 = vrot.lane.b32.xlu0 %v417, 72
  %v626 = vpop.permute.xlu0 %625
  %v628 = vsel %vm99, %v624, 0
  %v631 = vsel %vm99, %v626, 0
  %633 = vmatpush.bf16.xpose.msra.mxu0 0
  %634 = vmatpush.bf16.xpose.msra.mxu0 0
  %635 = vmatpush.bf16.xpose.msra.mxu0 0
  %636 = vmatpush.bf16.xpose.msra.mxu0 0
  %637 = vmatpush.bf16.xpose.msra.mxu0 0
  %638 = vmatpush.bf16.xpose.msra.mxu0 0
  %639 = vmatpush.bf16.xpose.msra.mxu0 0
  %640 = vmatpush.bf16.xpose.msra.mxu0 %v631
  %641 = vmatmul.bf16.gmra.mxu0 %v628
  %v642 = vpop.f32.mrf.mxu0
  %v643 = vadd.f32 0.0, %v642
  %v644 = vpop.f32.mrf.mxu0
  %v645 = vadd.f32 0.0, %v644
  %646 = vdwg.mxu0
  %v647 = vsel %vm120, %v643, -inf
  %648 = vmax.xlane.f32.xlu0 %v647
  %v649 = vpop.xlane.xlu0 %648
  %v650 = vsel %vm124, %v645, -inf
  %651 = vmax.xlane.f32.xlu0 %v650
  %v652 = vpop.xlane.xlu0 %651
  %v653 = vsub.f32 %v643, %v649
  %v654 = vsub.f32 %v645, %v652
  %v655 = vmul.f32 %v653, 1.442695
  %v656 = vpow.pop %v655
  %v657 = vmul.f32 %v654, 1.442695
  %v658 = vpow.pop %v657
  %v659 = vsel %vm120, %v656, 0.0
  %660 = vadd.xlane.f32.xlu0 %v659
  %v661 = vpop.xlane.xlu0 %660
  %v662 = vsel %vm124, %v658, 0.0
  %663 = vadd.xlane.f32.xlu0 %v662
  %v664 = vpop.xlane.xlu0 %663
  %v665 = vrcp.pop %v661
  %v666 = vrcp.pop %v664
  %v667 = vmul.f32 %v656, %v665
  %v668 = vmul.f32 %v658, %v666
  %v669 = vpack.c.bf16 %v668, %v667
  %670 = vrot.lane.b32.xlu0 %v417, 40
  %v671 = vpop.permute.xlu0 %670
  %v673 = vsel %vm120, %v669, 0
  %v676 = vand.u32 %v671, %v153
  %678 = vmatpush.bf16.msra.mxu0 0
  %679 = vmatpush.bf16.msra.mxu0 0
  %680 = vmatpush.bf16.msra.mxu0 0
  %681 = vmatpush.bf16.msra.mxu0 0
  %682 = vmatpush.bf16.msra.mxu0 0
  %683 = vmatpush.bf16.msra.mxu0 0
  %684 = vmatpush.bf16.msra.mxu0 0
  %685 = vmatpush.bf16.msra.mxu0 %v676
  %686 = vmatmul.bf16.gmra.mxu0 %v673
  %v687 = vpop.f32.mrf.mxu0
  %v688 = vadd.f32 0.0, %v687
  %v689 = vpop.f32.mrf.mxu0
  %v690 = vadd.f32 0.0, %v689
  %691 = vdwg.mxu0
  %694 = vrot.lane.b32.xlu0 %v550, 8
  %v695 = vpop.permute.xlu0 %694
  %696 = vrot.lane.b32.xlu0 %v552, 8
  %v697 = vpop.permute.xlu0 %696
  %702 = vrot.lane.b32.xlu0 %v619, 16
  %v703 = vpop.permute.xlu0 %702
  %704 = vrot.lane.b32.xlu0 %v621, 16
  %v705 = vpop.permute.xlu0 %704
  %710 = vrot.lane.b32.xlu0 %v688, 24
  %v711 = vpop.permute.xlu0 %710
  %712 = vrot.lane.b32.xlu0 %v690, 24
  %v713 = vpop.permute.xlu0 %712
  %v716 = vsel %vm99, %v481, %v695
  %v717 = vsel %vm99, %v483, %v697
  %v718 = vsel %vm404, %v716, %v703
  %v719 = vsel %vm404, %v717, %v705
  %v720 = vsel %vm407, %v718, %v711
  %v721 = vsel %vm407, %v719, %v713
  %vm724 = vcmask 1040384
  %v725 = vrot.slane %v720, 7
  %v726 = vrot.slane %v721, 7
  %v727 = vsel %vm724, %v725, %v726
  %v730 = vsel %vm724, %v409, %v725
  %v731 = vpack.c.bf16 %v730, %v408
  %v732 = vpack.c.bf16 %v727, %v727
  %v733 = vld [vmem:[%s3] sm:$0xf]
  %v734 = vld [vmem:[%s3 + $0x4] sm:$0xf]
  %v735 = vld [vmem:[%s3 + $0x8] sm:$0xf]
  %v736 = vld [vmem:[%s3 + $0xc] sm:$0xf]
  %v737 = vld [vmem:[%s4] sm:$0x1]
  %v739 = vperm.slane %v737, 0
  %v745 = vunpack.c.l.b16 %v733
  %v746 = vunpack.c.l.b16 %v734
  %v747 = vunpack.c.l.b16 %v735
  %v748 = vunpack.c.l.b16 %v736
  %v749 = vpack.c.b16 %v746, %v745
  %v750 = vpack.c.b16 %v748, %v747
  %v754 = vsel %vm70, %v731, 0
  %v757 = vsel %vm70, %v732, 0
  %759 = vmatpush.bf16.msra.mxu0 0
  %760 = vmatpush.bf16.msra.mxu0 0
  %761 = vmatpush.bf16.msra.mxu0 0
  %762 = vmatpush.bf16.msra.mxu0 0
  %763 = vmatpush.bf16.msra.mxu0 0
  %764 = vmatpush.bf16.msra.mxu0 0
  %765 = vmatpush.bf16.msra.mxu0 %v750
  %766 = vmatpush.bf16.msra.mxu0 %v749
  %767 = vmatmul.bf16.gmra.mxu0 %v754
  %v768 = vpop.f32.mrf.mxu0
  %v769 = vadd.f32 %v739, %v768
  %v770 = vpop.f32.mrf.mxu0
  %v771 = vadd.f32 %v739, %v770
  %772 = vmatmul.bf16.gmra.mxu0 %v757
  %v773 = vpop.f32.mrf.mxu0
  %v774 = vadd.f32 %v739, %v773
  %v775 = vpop.f32.mrf.mxu0
  %776 = vdwg.mxu0
  %v777 = vadd.f32 %v45, %v769
  %v778 = vadd.f32 %v46, %v771
  %v779 = vadd.f32 %v47, %v774
  %v780 = vsel %vm70, %v777, 0.0
  %v781 = vsel %vm70, %v778, 0.0
  %v782 = vadd.f32 %v780, %v781
  %vm783 = vcmask 254976
  %v784 = vsel %vm783, %v779, 0.0
  %v785 = vadd.f32 %v782, %v784
  %v786 = vrot.slane %v785, 4
  %v787 = vadd.f32 %v785, %v786
  %v788 = vrot.slane %v787, 2
  %v789 = vadd.f32 %v787, %v788
  %v790 = vrot.slane %v789, 1
  %v791 = vadd.f32 %v789, %v790
  %v792 = vrcp.pop 18.0
  %v793 = vmul.f32 18.0, %v792
  %v794 = vsub.f32 1.0, %v793
  %v795 = vmul.f32 %v792, %v794
  %v796 = vadd.f32 %v792, %v795
  %vm797 = vweird.f32 %v792
  %v798 = vsel %vm797, %v792, %v796
  %v799 = vmul.f32 %v791, %v798
  %v800 = vsub.f32 %v777, %v799
  %v801 = vsub.f32 %v778, %v799
  %v802 = vsub.f32 %v779, %v799
  %v803 = vmul.f32 %v800, %v800
  %v804 = vmul.f32 %v801, %v801
  %v805 = vmul.f32 %v802, %v802
  %v806 = vsel %vm70, %v803, 0.0
  %v807 = vsel %vm70, %v804, 0.0
  %v808 = vadd.f32 %v806, %v807
  %v809 = vsel %vm783, %v805, 0.0
  %v810 = vadd.f32 %v808, %v809
  %v811 = vrot.slane %v810, 4
  %v812 = vadd.f32 %v810, %v811
  %v813 = vrot.slane %v812, 2
  %v814 = vadd.f32 %v812, %v813
  %v815 = vrot.slane %v814, 1
  %v816 = vadd.f32 %v814, %v815
  %v817 = vmul.f32 %v816, %v798
  %v818 = vadd.f32 %v817, 1e-05
  %v819 = vrsqrt.pop %v818
  %v820 = vmul.f32 %v819, %v818
  %v821 = vmul.f32 %v820, %v819
  %v822 = vmul.f32 0.5, %v821
  %v823 = vsub.f32 1.5, %v822
  %v824 = vmul.f32 %v819, %v823
  %vm825 = vweird.f32 %v818
  %vm826 = vweird.f32 %v819
  %vm827 = vmor %vm825, %vm826
  %v828 = vsel %vm827, %v819, %v824
  %v829 = vmul.f32 %v800, %v828
  %v830 = vmul.f32 %v801, %v828
  %v831 = vmul.f32 %v802, %v828
  %v832 = vld [vmem:[%s5] sm:$0x1]
  %v834 = vperm.slane %v832, 0
  %v836 = vmul.f32 %v829, %v834
  %v837 = vmul.f32 %v830, %v834
  %v838 = vmul.f32 %v831, %v834
  %v839 = vld [vmem:[%s6] sm:$0x1]
  %v841 = vperm.slane %v839, 0
  %v843 = vadd.f32 %v836, %v841
  %v844 = vadd.f32 %v837, %v841
  %v845 = vadd.f32 %v838, %v841
  %v846 = vpack.c.bf16 %v844, %v843
  %v847 = vpack.c.bf16 %v845, %v845
  %v848 = vld [vmem:[%s7] sm:$0xf]
  %v849 = vld [vmem:[%s7 + $0x4] sm:$0xf]
  %v850 = vld [vmem:[%s7 + $0x8] sm:$0xf]
  %v851 = vld [vmem:[%s7 + $0xc] sm:$0xf]
  %v852 = vld [vmem:[%s8] sm:$0x1]
  %v854 = vperm.slane %v852, 0
  %v860 = vunpack.c.l.b16 %v848
  %v861 = vunpack.c.l.b16 %v849
  %v862 = vunpack.c.l.b16 %v850
  %v863 = vunpack.c.l.b16 %v851
  %v864 = vpack.c.b16 %v861, %v860
  %v865 = vpack.c.b16 %v863, %v862
  %v869 = vsel %vm70, %v846, 0
  %v872 = vsel %vm70, %v847, 0
  %874 = vmatpush.bf16.msra.mxu0 0
  %875 = vmatpush.bf16.msra.mxu0 0
  %876 = vmatpush.bf16.msra.mxu0 0
  %877 = vmatpush.bf16.msra.mxu0 0
  %878 = vmatpush.bf16.msra.mxu0 0
  %879 = vmatpush.bf16.msra.mxu0 0
  %880 = vmatpush.bf16.msra.mxu0 %v865
  %881 = vmatpush.bf16.msra.mxu0 %v864
  %882 = vmatmul.bf16.gmra.mxu0 %v869
  %v883 = vpop.f32.mrf.mxu0
  %v884 = vadd.f32 %v854, %v883
  %v885 = vpop.f32.mrf.mxu0
  %v886 = vadd.f32 %v854, %v885
  %887 = vmatmul.bf16.gmra.mxu0 %v872
  %v888 = vpop.f32.mrf.mxu0
  %v889 = vadd.f32 %v854, %v888
  %v890 = vpop.f32.mrf.mxu0
  %891 = vdwg.mxu0
  %v892 = vmul.f32 %v884, 0.5
  %v893 = vmul.f32 %v886, 0.5
  %v894 = vmul.f32 %v889, 0.5
  %v895 = vmul.f32 %v884, 0.70710677
  %v896 = vmul.f32 %v886, 0.70710677
  %v897 = vmul.f32 %v889, 0.70710677
  %vm898 = vcmp.ge.f32.partialorder %v895, 0.0
  %vm899 = vcmp.ge.f32.partialorder %v896, 0.0
  %vm900 = vcmp.ge.f32.partialorder %v897, 0.0
  %v901 = vsel %vm898, 1.0, -1.0
  %v902 = vsel %vm899, 1.0, -1.0
  %v903 = vsel %vm900, 1.0, -1.0
  %v904 = vmul.f32 %v895, %v901
  %v905 = vmul.f32 %v896, %v902
  %v906 = vmul.f32 %v897, %v903
  %v907 = vmul.f32 %v904, 0.3275911
  %v908 = vmul.f32 %v905, 0.3275911
  %v909 = vmul.f32 %v906, 0.3275911
  %v910 = vadd.f32 %v907, 1.0
  %v911 = vadd.f32 %v908, 1.0
  %v912 = vadd.f32 %v909, 1.0
  %v913 = vrcp.pop %v910
  %v914 = vmul.f32 %v910, %v913
  %v915 = vsub.f32 1.0, %v914
  %v916 = vmul.f32 %v913, %v915
  %v917 = vadd.f32 %v913, %v916
  %vm918 = vweird.f32 %v910
  %vm919 = vweird.f32 %v913
  %vm920 = vmor %vm918, %vm919
  %v921 = vsel %vm920, %v913, %v917
  %v922 = vand.u32 2147483647, %v910
  %vm923 = vcmp.eq.f32.partialorder %v922, 8.507059e+37
  %v924 = vand.u32 %v910, 2147483648
  %v925 = vor.u32 1.1754944e-38, %v924
  %v926 = vsel %vm923, %v925, %v921
  %v927 = vmul.f32 1.0, %v926
  %v928 = vrcp.pop %v911
  %v929 = vmul.f32 %v911, %v928
  %v930 = vsub.f32 1.0, %v929
  %v931 = vmul.f32 %v928, %v930
  %v932 = vadd.f32 %v928, %v931
  %vm933 = vweird.f32 %v911
  %vm934 = vweird.f32 %v928
  %vm935 = vmor %vm933, %vm934
  %v936 = vsel %vm935, %v928, %v932
  %v937 = vand.u32 2147483647, %v911
  %vm938 = vcmp.eq.f32.partialorder %v937, 8.507059e+37
  %v939 = vand.u32 %v911, 2147483648
  %v940 = vor.u32 1.1754944e-38, %v939
  %v941 = vsel %vm938, %v940, %v936
  %v942 = vmul.f32 1.0, %v941
  %v943 = vrcp.pop %v912
  %v944 = vmul.f32 %v912, %v943
  %v945 = vsub.f32 1.0, %v944
  %v946 = vmul.f32 %v943, %v945
  %v947 = vadd.f32 %v943, %v946
  %vm948 = vweird.f32 %v912
  %vm949 = vweird.f32 %v943
  %vm950 = vmor %vm948, %vm949
  %v951 = vsel %vm950, %v943, %v947
  %v952 = vand.u32 2147483647, %v912
  %vm953 = vcmp.eq.f32.partialorder %v952, 8.507059e+37
  %v954 = vand.u32 %v912, 2147483648
  %v955 = vor.u32 1.1754944e-38, %v954
  %v956 = vsel %vm953, %v955, %v951
  %v957 = vmul.f32 1.0, %v956
  %v958 = vmul.f32 %v927, 1.0614054
  %v959 = vmul.f32 %v942, 1.0614054
  %v960 = vmul.f32 %v957, 1.0614054
  %v961 = vadd.f32 %v958, -1.4531521
  %v962 = vadd.f32 %v959, -1.4531521
  %v963 = vadd.f32 %v960, -1.4531521
  %v964 = vmul.f32 %v961, %v927
  %v965 = vmul.f32 %v962, %v942
  %v966 = vmul.f32 %v963, %v957
  %v967 = vadd.f32 %v964, 1.4214138
  %v968 = vadd.f32 %v965, 1.4214138
  %v969 = vadd.f32 %v966, 1.4214138
  %v970 = vmul.f32 %v967, %v927
  %v971 = vmul.f32 %v968, %v942
  %v972 = vmul.f32 %v969, %v957
  %v973 = vadd.f32 %v970, -0.28449672
  %v974 = vadd.f32 %v971, -0.28449672
  %v975 = vadd.f32 %v972, -0.28449672
  %v976 = vmul.f32 %v973, %v927
  %v977 = vmul.f32 %v974, %v942
  %v978 = vmul.f32 %v975, %v957
  %v979 = vadd.f32 %v976, 0.2548296
  %v980 = vadd.f32 %v977, 0.2548296
  %v981 = vadd.f32 %v978, 0.2548296
  %v982 = vmul.f32 %v979, %v927
  %v983 = vmul.f32 %v980, %v942
  %v984 = vmul.f32 %v981, %v957
  %v985 = vmul.f32 %v904, %v904
  %v986 = vmul.f32 %v905, %v905
  %v987 = vmul.f32 %v906, %v906
  %v988 = vsub.f32 0.0, %v985
  %v989 = vsub.f32 0.0, %v986
  %v990 = vsub.f32 0.0, %v987
  %v991 = vmul.f32 %v988, 1.442695
  %v992 = vpow.pop %v991
  %v993 = vmul.f32 %v989, 1.442695
  %v994 = vpow.pop %v993
  %v995 = vmul.f32 %v990, 1.442695
  %v996 = vpow.pop %v995
  %v997 = vmul.f32 %v982, %v992
  %v998 = vmul.f32 %v983, %v994
  %v999 = vmul.f32 %v984, %v996
  %v1000 = vsub.f32 1.0, %v997
  %v1001 = vsub.f32 1.0, %v998
  %v1002 = vsub.f32 1.0, %v999
  %v1003 = vmul.f32 %v901, %v1000
  %v1004 = vmul.f32 %v902, %v1001
  %v1005 = vmul.f32 %v903, %v1002
  %v1006 = vadd.f32 %v1003, 1.0
  %v1007 = vadd.f32 %v1004, 1.0
  %v1008 = vadd.f32 %v1005, 1.0
  %v1009 = vmul.f32 %v892, %v1006
  %v1010 = vmul.f32 %v893, %v1007
  %v1011 = vmul.f32 %v894, %v1008
  %v1012 = vpack.c.bf16 %v1010, %v1009
  %v1013 = vpack.c.bf16 %v1011, %v1011
  %v1014 = vld [vmem:[%s9] sm:$0xf]
  %v1015 = vld [vmem:[%s9 + $0x4] sm:$0xf]
  %v1016 = vld [vmem:[%s9 + $0x8] sm:$0xf]
  %v1017 = vld [vmem:[%s9 + $0xc] sm:$0xf]
  %v1018 = vld [vmem:[%s9 + $0x10] sm:$0xf]
  %v1019 = vld [vmem:[%s9 + $0x14] sm:$0xf]
  %v1020 = vld [vmem:[%s9 + $0x18] sm:$0xf]
  %v1021 = vld [vmem:[%s9 + $0x1c] sm:$0xf]
  %v1022 = vld [vmem:[%s10] sm:$0x1]
  %v1024 = vperm.slane %v1022, 0
  %v1034 = vunpack.c.l.b16 %v1014
  %v1035 = vunpack.c.l.b16 %v1015
  %v1036 = vunpack.c.l.b16 %v1016
  %v1037 = vunpack.c.l.b16 %v1017
  %v1038 = vunpack.c.l.b16 %v1018
  %v1039 = vunpack.c.l.b16 %v1019
  %v1040 = vunpack.c.l.b16 %v1020
  %v1041 = vunpack.c.l.b16 %v1021
  %v1042 = vpack.c.b16 %v1035, %v1034
  %v1043 = vpack.c.b16 %v1037, %v1036
  %v1044 = vpack.c.b16 %v1039, %v1038
  %v1045 = vpack.c.b16 %v1041, %v1040
  %vm1050 = vcmask 523264
  %v1052 = vsel %vm1050, %v1012, 0
  %v1055 = vsel %vm1050, %v1013, 0
  %1057 = vmatpush.bf16.msra.mxu0 0
  %1058 = vmatpush.bf16.msra.mxu0 0
  %1059 = vmatpush.bf16.msra.mxu0 0
  %1060 = vmatpush.bf16.msra.mxu0 0
  %1061 = vmatpush.bf16.msra.mxu0 %v1045
  %1062 = vmatpush.bf16.msra.mxu0 %v1044
  %1063 = vmatpush.bf16.msra.mxu0 %v1043
  %1064 = vmatpush.bf16.msra.mxu0 %v1042
  %1065 = vmatmul.bf16.gmra.mxu0 %v1052
  %v1066 = vpop.f32.mrf.mxu0
  %v1067 = vadd.f32 %v1024, %v1066
  %v1068 = vpop.f32.mrf.mxu0
  %v1069 = vadd.f32 %v1024, %v1068
  %1070 = vmatmul.bf16.gmra.mxu0 %v1055
  %v1071 = vpop.f32.mrf.mxu0
  %v1072 = vadd.f32 %v1024, %v1071
  %v1073 = vpop.f32.mrf.mxu0
  %1074 = vdwg.mxu0
  %v1075 = vadd.f32 %v843, %v1067
  %v1076 = vadd.f32 %v844, %v1069
  %v1077 = vadd.f32 %v845, %v1072
  %v1078 = vsel %vm70, %v1075, 0.0
  %v1079 = vsel %vm70, %v1076, 0.0
  %v1080 = vadd.f32 %v1078, %v1079
  %v1081 = vsel %vm783, %v1077, 0.0
  %v1082 = vadd.f32 %v1080, %v1081
  %v1083 = vrot.slane %v1082, 4
  %v1084 = vadd.f32 %v1082, %v1083
  %v1085 = vrot.slane %v1084, 2
  %v1086 = vadd.f32 %v1084, %v1085
  %v1087 = vrot.slane %v1086, 1
  %v1088 = vadd.f32 %v1086, %v1087
  %v1089 = vmul.f32 %v1088, %v798
  %v1090 = vsub.f32 %v1075, %v1089
  %v1091 = vsub.f32 %v1076, %v1089
  %v1092 = vsub.f32 %v1077, %v1089
  %v1093 = vmul.f32 %v1090, %v1090
  %v1094 = vmul.f32 %v1091, %v1091
  %v1095 = vmul.f32 %v1092, %v1092
  %v1096 = vsel %vm70, %v1093, 0.0
  %v1097 = vsel %vm70, %v1094, 0.0
  %v1098 = vadd.f32 %v1096, %v1097
  %v1099 = vsel %vm783, %v1095, 0.0
  %v1100 = vadd.f32 %v1098, %v1099
  %v1101 = vrot.slane %v1100, 4
  %v1102 = vadd.f32 %v1100, %v1101
  %v1103 = vrot.slane %v1102, 2
  %v1104 = vadd.f32 %v1102, %v1103
  %v1105 = vrot.slane %v1104, 1
  %v1106 = vadd.f32 %v1104, %v1105
  %v1107 = vmul.f32 %v1106, %v798
  %v1108 = vadd.f32 %v1107, 1e-05
  %v1109 = vrsqrt.pop %v1108
  %v1110 = vmul.f32 %v1109, %v1108
  %v1111 = vmul.f32 %v1110, %v1109
  %v1112 = vmul.f32 0.5, %v1111
  %v1113 = vsub.f32 1.5, %v1112
  %v1114 = vmul.f32 %v1109, %v1113
  %vm1115 = vweird.f32 %v1108
  %vm1116 = vweird.f32 %v1109
  %vm1117 = vmor %vm1115, %vm1116
  %v1118 = vsel %vm1117, %v1109, %v1114
  %v1119 = vmul.f32 %v1090, %v1118
  %v1120 = vmul.f32 %v1091, %v1118
  %v1121 = vmul.f32 %v1092, %v1118
  %v1122 = vld [vmem:[%s11] sm:$0x1]
  %v1124 = vperm.slane %v1122, 0
  %v1126 = vmul.f32 %v1119, %v1124
  %v1127 = vmul.f32 %v1120, %v1124
  %v1128 = vmul.f32 %v1121, %v1124
  %v1129 = vld [vmem:[%s12] sm:$0x1]
  %v1131 = vperm.slane %v1129, 0
  %v1133 = vadd.f32 %v1126, %v1131
  %v1134 = vadd.f32 %v1127, %v1131
  %v1135 = vadd.f32 %v1128, %v1131
  %1136 = vst.msk [vmem:[%s13] sm:$0xff] %vm70, %v1133
  %1137 = vst.msk [vmem:[%s13 + $0x8] sm:$0xff] %vm70, %v1134
  %1138 = vst.msk [vmem:[%s13 + $0x10] sm:$0x3] %vm783, %v1135
  // Predicated region
  $region54: #{attention_classifier_forward.5} parent=0 // pred_check
    _
  $region55: #{attention_classifier_forward.5} parent=0 // pred_check_branch
    %1140 = sbr.rel (0) target = $region57
  $region56: #{attention_classifier_forward.5} parent=0 // pred_region
    _
  $region57: #{attention_classifier_forward.5} parent=0 // pred_fallthru
    _
  // Predicated region
  $region58: #{attention_classifier_forward.5} parent=0 // pred_check
    _
  $region59: #{attention_classifier_forward.5} parent=0 // pred_check_branch
    %1142 = sbr.rel (0) target = $region61
  $region60: #{attention_classifier_forward.5} parent=0 // pred_region
    _
  $region61: #{attention_classifier_forward.5} parent=0 // pred_fallthru
    _

</llo_original>
